<compile_context>
chip_gen: v7x
topology: tpu7x:2x2x1
jax: 0.10.0
libtpu: 0.0.40
codegen_flags: <defaults>
</compile_context>

<pallas_src>
import jax
import jax.numpy as jnp
from jax.experimental import pallas as pl
from jax.experimental.pallas import tpu as pltpu

# ---------------- problem sizes (consistent with the module) ----------------
C0 = 8                    # features of first InstanceNorm3d  (inp channels)
C1 = 8                    # features of second InstanceNorm3d
S0 = 2 * 2 * 2            # starting spatial size (2,2,2) flattened
WDIM = 2 * C0 + 2 * C1    # width of the style/FiLM vector w
EPS = 1e-5                # PyTorch InstanceNorm3d default eps
CONST_ROWS = C1 + 2       # packed constants: W1 rows, W2 row, bias row


# ---------------------------- Pallas kernel ---------------------------------
def adaptive_decoder_kernel(w_ref, y0_ref, const_ref, o_ref):
    """One batch tile (batch on the lane axis).

    w_ref    : [WDIM, BT]   VMEM  per-sample FiLM vectors (transposed w)
    y0_ref   : [S0, C0]     VMEM  precomputed InstanceNorm(conv0(inp)) constant
    const_ref: [C1+2, C0]   SMEM  rows 0..C1-1 = conv1 W[k, c];
                                  row C1 = conv2 W[c]; [C1+1, 0] = conv2 bias
    o_ref    : [S0, BT]     output at the pre-upsample resolution
    """
    # ---- FiLM0 (scale/shift from w) + ReLU, unrolled over input channel ----
    # x_c[s, b] = relu(y0[s, c] * w[c, b] + w[C0 + c, b])
    x = []
    for c in range(C0):
        col = y0_ref[:, c:c + 1]                     # [S0, 1]  lane-broadcast
        sc = w_ref[c:c + 1, :]                       # [1, BT]  sublane-broadcast
        sh = w_ref[C0 + c:C0 + c + 1, :]             # [1, BT]
        x.append(jnp.maximum(col * sc + sh, 0.0))    # [S0, BT]

    # ---- conv1 -> InstanceNorm -> FiLM1 -> ReLU -> conv2, per out channel --
    # conv1 bias is omitted: it is cancelled exactly by the InstanceNorm mean.
    out = None
    for k in range(C1):
        acc = x[0] * const_ref[k, 0]
        for c in range(1, C0):
            acc = acc + x[c] * const_ref[k, c]               # [S0, BT]
        mean = jnp.mean(acc, axis=0, keepdims=True)          # [1, BT]
        ctr = acc - mean
        var = jnp.mean(ctr * ctr, axis=0, keepdims=True)     # biased variance
        z = ctr * jax.lax.rsqrt(var + EPS)
        sc = w_ref[2 * C0 + k:2 * C0 + k + 1, :]             # FiLM1 scale
        sh = w_ref[2 * C0 + C1 + k:2 * C0 + C1 + k + 1, :]   # FiLM1 shift
        z = jnp.maximum(z * sc + sh, 0.0)
        term = z * const_ref[C1, k]                          # conv2 weight
        out = term if out is None else out + term
    o_ref[...] = out + const_ref[C1 + 1, 0]                  # conv2 bias


# ------------------------------ wrapper --------------------------------------
@jax.jit
def adaptive_decoder_forward(w, inp_param,
                             conv0_w, conv0_b,
                             conv1_w, conv1_b,
                             conv2_w, conv2_b):
    """w: [B, WDIM].  Returns NCDHW output [B, 1, 4, 4, 4]."""
    B = w.shape[0]
    del conv1_b  # bias immediately before InstanceNorm is a mathematical no-op

    # ---- hoisted batch-independent prologue: conv0 + first InstanceNorm ----
    x0 = inp_param.reshape(C0, S0).T.astype(jnp.float32)          # [S0, C0]
    h0 = x0 @ conv0_w.reshape(C0, C0).T + conv0_b[None, :]
    m = h0.mean(axis=0, keepdims=True)
    v = ((h0 - m) ** 2).mean(axis=0, keepdims=True)
    y0 = (h0 - m) * jax.lax.rsqrt(v + EPS)                        # [S0, C0]

    # ---- pack the remaining tiny weights into ONE SMEM constant block ------
    consts = jnp.zeros((CONST_ROWS, C0), jnp.float32)
    consts = consts.at[0:C1, :].set(conv1_w.reshape(C1, C0))      # W1[k, c]
    consts = consts.at[C1, :].set(conv2_w.reshape(C1))            # W2[c]
    consts = consts.at[C1 + 1, 0].set(conv2_b[0])                 # b2

    # ---- batch tiling: batch on the lane axis -------------------------------
    BT = 128 * max(1, min(4, pl.cdiv(B, 128)))    # 128..512 samples per step
    B_pad = pl.cdiv(B, BT) * BT
    w_t = jnp.pad(w.astype(jnp.float32).T, ((0, 0), (0, B_pad - B)))  # [WDIM, B_pad]

    out_small = pl.pallas_call(
        adaptive_decoder_kernel,
        out_shape=jax.ShapeDtypeStruct((S0, B_pad), jnp.float32),
        grid=(B_pad // BT,),
        in_specs=[
            pl.BlockSpec((WDIM, BT), lambda i: (0, i)),       # w (per-tile)
            pl.BlockSpec((S0, C0), lambda i: (0, 0)),         # y0 (resident)
            pl.BlockSpec(memory_space=pltpu.MemorySpace.SMEM),  # packed consts
        ],
        out_specs=pl.BlockSpec((S0, BT), lambda i: (0, i)),   # lane-dense store
        compiler_params=pltpu.CompilerParams(
            dimension_semantics=("parallel",)),
    )(w_t, y0, consts)

    # ---- epilogue: drop padding, restore NCDHW, 2x nearest upsample --------
    small = out_small[:, :B].T.reshape(B, 1, 2, 2, 2)
    out = jnp.repeat(jnp.repeat(jnp.repeat(small, 2, axis=2), 2, axis=3),
                     2, axis=4)
    return out                                                # [B, 1, 4, 4, 4]


# ------------------------- pure-JAX reference --------------------------------
def reference_forward(w, inp_param, conv0_w, conv0_b,
                      conv1_w, conv1_b, conv2_w, conv2_b):
    """Faithful translation of the PyTorch module (original op order)."""
    B = w.shape[0]

    def pconv(x, W, bias):            # 1x1x1 conv, W: [Cout, Cin]
        return (jnp.einsum("oc,bcdhw->bodhw", W, x)
                + bias[None, :, None, None, None])

    def inorm(x):
        mean = x.mean(axis=(2, 3, 4), keepdims=True)
        var = ((x - mean) ** 2).mean(axis=(2, 3, 4), keepdims=True)
        return (x - mean) * jax.lax.rsqrt(var + EPS)

    x = jnp.tile(inp_param, (B, 1, 1, 1, 1))            # inp.repeat([b,1,1,1,1])
    x = pconv(x, conv0_w.reshape(C0, C0), conv0_b)
    x = inorm(x)
    s = w[:, 0:2 * C0, None, None, None]
    x = x * s[:, :C0] + s[:, C0:]
    x = jnp.maximum(x, 0.0)
    x = jnp.repeat(jnp.repeat(jnp.repeat(x, 2, axis=2), 2, axis=3), 2, axis=4)
    x = pconv(x, conv1_w.reshape(C1, C0), conv1_b)
    x = inorm(x)
    s = w[:, 2 * C0:2 * C0 + 2 * C1, None, None, None]
    x = x * s[:, :C1] + s[:, C1:]
    x = jnp.maximum(x, 0.0)
    x = pconv(x, conv2_w.reshape(1, C1), conv2_b)
    return x


# --------------------------------- main ---------------------------------------
if __name__ == "__main__":
    key = jax.random.PRNGKey(0)
    keys = jax.random.split(key, 8)

    inp_param = jax.random.normal(keys[0], (1, C0, 2, 2, 2), jnp.float32)
    conv0_w = jax.random.normal(keys[1], (C0, C0, 1, 1, 1), jnp.float32) * 0.2
    conv0_b = jax.random.normal(keys[2], (C0,), jnp.float32) * 0.1
    conv1_w = jax.random.normal(keys[3], (C1, C0, 1, 1, 1), jnp.float32) * 0.2
    conv1_b = jax.random.normal(keys[4], (C1,), jnp.float32) * 0.1
    conv2_w = jax.random.normal(keys[5], (1, C1, 1, 1, 1), jnp.float32) * 0.2
    conv2_b = jax.random.normal(keys[6], (1,), jnp.float32) * 0.1

    # small batch (spec-sized) + a larger batch that exercises >1 grid step
    # and lane-axis padding.
    for B in (2, 600):
        w = jax.random.normal(jax.random.fold_in(keys[7], B),
                              (B, WDIM), jnp.float32)

        out = adaptive_decoder_forward(w, inp_param, conv0_w, conv0_b,
                                       conv1_w, conv1_b, conv2_w, conv2_b)
        out = jax.block_until_ready(out)

        ref = reference_forward(w, inp_param, conv0_w, conv0_b,
                                conv1_w, conv1_b, conv2_w, conv2_b)
        ref = jax.block_until_ready(ref)

        assert out.shape == (B, 1, 4, 4, 4), out.shape
        assert jnp.allclose(out, ref, rtol=1e-4, atol=1e-4), (
            B, float(jnp.max(jnp.abs(out - ref))))

    print("KERNEL_OK")
</pallas_src>

<mosaic_0001>
module attributes {stable_mosaic.version = 11 : i64} {
  func.func @adaptive_decoder_kernel(%arg0: i32, %arg1: memref<32x128xf32, #tpu.memory_space<vmem>>, %arg2: memref<8x8xf32, #tpu.memory_space<vmem>>, %arg3: memref<10x8xf32, #tpu.memory_space<smem>>, %arg4: memref<8x128xf32, #tpu.memory_space<vmem>>) attributes {dimension_semantics = [#tpu.dimension_semantics<parallel>], iteration_bounds = array<i64: 1>, scalar_prefetch = 0 : i64, scratch_operands = 0 : i64, tpu.core_type = #tpu.core_type<tc>, window_params = [{transform_indices = @transform_0, window_bounds = array<i64: 32, 128>}, {pipeline_mode = #tpu.pipeline_mode<synchronous>, transform_indices = @transform_1, window_bounds = array<i64: 8, 8>}, {transform_indices = @transform_2, window_bounds = array<i64: 10, 8>}, {transform_indices = @transform_3, window_bounds = array<i64: 8, 128>}]} {
    %c0 = arith.constant 0 : index
    %c0_0 = arith.constant 0 : index
    %0 = vector.load %arg2[%c0, %c0_0] : memref<8x8xf32, #tpu.memory_space<vmem>>, vector<8x1xf32>
    %c0_1 = arith.constant 0 : index
    %c0_2 = arith.constant 0 : index
    %1 = vector.load %arg1[%c0_1, %c0_2] : memref<32x128xf32, #tpu.memory_space<vmem>>, vector<1x128xf32>
    %c8 = arith.constant 8 : index
    %c0_3 = arith.constant 0 : index
    %2 = vector.load %arg1[%c8, %c0_3] : memref<32x128xf32, #tpu.memory_space<vmem>>, vector<1x128xf32>
    %3 = vector.broadcast %0 : vector<8x1xf32> to vector<8x128xf32>
    %4 = vector.broadcast %1 : vector<1x128xf32> to vector<8x128xf32>
    %5 = arith.mulf %3, %4 : vector<8x128xf32>
    %6 = vector.broadcast %2 : vector<1x128xf32> to vector<8x128xf32>
    %7 = arith.addf %5, %6 : vector<8x128xf32>
    %cst = arith.constant 0.000000e+00 : f32
    %8 = vector.broadcast %cst : f32 to vector<8x128xf32>
    %9 = arith.maximumf %7, %8 : vector<8x128xf32>
    %c0_4 = arith.constant 0 : index
    %c1 = arith.constant 1 : index
    %10 = vector.load %arg2[%c0_4, %c1] : memref<8x8xf32, #tpu.memory_space<vmem>>, vector<8x1xf32>
    %c1_5 = arith.constant 1 : index
    %c0_6 = arith.constant 0 : index
    %11 = vector.load %arg1[%c1_5, %c0_6] : memref<32x128xf32, #tpu.memory_space<vmem>>, vector<1x128xf32>
    %c9 = arith.constant 9 : index
    %c0_7 = arith.constant 0 : index
    %12 = vector.load %arg1[%c9, %c0_7] : memref<32x128xf32, #tpu.memory_space<vmem>>, vector<1x128xf32>
    %13 = vector.broadcast %10 : vector<8x1xf32> to vector<8x128xf32>
    %14 = vector.broadcast %11 : vector<1x128xf32> to vector<8x128xf32>
    %15 = arith.mulf %13, %14 : vector<8x128xf32>
    %16 = vector.broadcast %12 : vector<1x128xf32> to vector<8x128xf32>
    %17 = arith.addf %15, %16 : vector<8x128xf32>
    %cst_8 = arith.constant 0.000000e+00 : f32
    %18 = vector.broadcast %cst_8 : f32 to vector<8x128xf32>
    %19 = arith.maximumf %17, %18 : vector<8x128xf32>
    %c0_9 = arith.constant 0 : index
    %c2 = arith.constant 2 : index
    %20 = vector.load %arg2[%c0_9, %c2] : memref<8x8xf32, #tpu.memory_space<vmem>>, vector<8x1xf32>
    %c2_10 = arith.constant 2 : index
    %c0_11 = arith.constant 0 : index
    %21 = vector.load %arg1[%c2_10, %c0_11] : memref<32x128xf32, #tpu.memory_space<vmem>>, vector<1x128xf32>
    %c10 = arith.constant 10 : index
    %c0_12 = arith.constant 0 : index
    %22 = vector.load %arg1[%c10, %c0_12] : memref<32x128xf32, #tpu.memory_space<vmem>>, vector<1x128xf32>
    %23 = vector.broadcast %20 : vector<8x1xf32> to vector<8x128xf32>
    %24 = vector.broadcast %21 : vector<1x128xf32> to vector<8x128xf32>
    %25 = arith.mulf %23, %24 : vector<8x128xf32>
    %26 = vector.broadcast %22 : vector<1x128xf32> to vector<8x128xf32>
    %27 = arith.addf %25, %26 : vector<8x128xf32>
    %cst_13 = arith.constant 0.000000e+00 : f32
    %28 = vector.broadcast %cst_13 : f32 to vector<8x128xf32>
    %29 = arith.maximumf %27, %28 : vector<8x128xf32>
    %c0_14 = arith.constant 0 : index
    %c3 = arith.constant 3 : index
    %30 = vector.load %arg2[%c0_14, %c3] : memref<8x8xf32, #tpu.memory_space<vmem>>, vector<8x1xf32>
    %c3_15 = arith.constant 3 : index
    %c0_16 = arith.constant 0 : index
    %31 = vector.load %arg1[%c3_15, %c0_16] : memref<32x128xf32, #tpu.memory_space<vmem>>, vector<1x128xf32>
    %c11 = arith.constant 11 : index
    %c0_17 = arith.constant 0 : index
    %32 = vector.load %arg1[%c11, %c0_17] : memref<32x128xf32, #tpu.memory_space<vmem>>, vector<1x128xf32>
    %33 = vector.broadcast %30 : vector<8x1xf32> to vector<8x128xf32>
    %34 = vector.broadcast %31 : vector<1x128xf32> to vector<8x128xf32>
    %35 = arith.mulf %33, %34 : vector<8x128xf32>
    %36 = vector.broadcast %32 : vector<1x128xf32> to vector<8x128xf32>
    %37 = arith.addf %35, %36 : vector<8x128xf32>
    %cst_18 = arith.constant 0.000000e+00 : f32
    %38 = vector.broadcast %cst_18 : f32 to vector<8x128xf32>
    %39 = arith.maximumf %37, %38 : vector<8x128xf32>
    %c0_19 = arith.constant 0 : index
    %c4 = arith.constant 4 : index
    %40 = vector.load %arg2[%c0_19, %c4] : memref<8x8xf32, #tpu.memory_space<vmem>>, vector<8x1xf32>
    %c4_20 = arith.constant 4 : index
    %c0_21 = arith.constant 0 : index
    %41 = vector.load %arg1[%c4_20, %c0_21] : memref<32x128xf32, #tpu.memory_space<vmem>>, vector<1x128xf32>
    %c12 = arith.constant 12 : index
    %c0_22 = arith.constant 0 : index
    %42 = vector.load %arg1[%c12, %c0_22] : memref<32x128xf32, #tpu.memory_space<vmem>>, vector<1x128xf32>
    %43 = vector.broadcast %40 : vector<8x1xf32> to vector<8x128xf32>
    %44 = vector.broadcast %41 : vector<1x128xf32> to vector<8x128xf32>
    %45 = arith.mulf %43, %44 : vector<8x128xf32>
    %46 = vector.broadcast %42 : vector<1x128xf32> to vector<8x128xf32>
    %47 = arith.addf %45, %46 : vector<8x128xf32>
    %cst_23 = arith.constant 0.000000e+00 : f32
    %48 = vector.broadcast %cst_23 : f32 to vector<8x128xf32>
    %49 = arith.maximumf %47, %48 : vector<8x128xf32>
    %c0_24 = arith.constant 0 : index
    %c5 = arith.constant 5 : index
    %50 = vector.load %arg2[%c0_24, %c5] : memref<8x8xf32, #tpu.memory_space<vmem>>, vector<8x1xf32>
    %c5_25 = arith.constant 5 : index
    %c0_26 = arith.constant 0 : index
    %51 = vector.load %arg1[%c5_25, %c0_26] : memref<32x128xf32, #tpu.memory_space<vmem>>, vector<1x128xf32>
    %c13 = arith.constant 13 : index
    %c0_27 = arith.constant 0 : index
    %52 = vector.load %arg1[%c13, %c0_27] : memref<32x128xf32, #tpu.memory_space<vmem>>, vector<1x128xf32>
    %53 = vector.broadcast %50 : vector<8x1xf32> to vector<8x128xf32>
    %54 = vector.broadcast %51 : vector<1x128xf32> to vector<8x128xf32>
    %55 = arith.mulf %53, %54 : vector<8x128xf32>
    %56 = vector.broadcast %52 : vector<1x128xf32> to vector<8x128xf32>
    %57 = arith.addf %55, %56 : vector<8x128xf32>
    %cst_28 = arith.constant 0.000000e+00 : f32
    %58 = vector.broadcast %cst_28 : f32 to vector<8x128xf32>
    %59 = arith.maximumf %57, %58 : vector<8x128xf32>
    %c0_29 = arith.constant 0 : index
    %c6 = arith.constant 6 : index
    %60 = vector.load %arg2[%c0_29, %c6] : memref<8x8xf32, #tpu.memory_space<vmem>>, vector<8x1xf32>
    %c6_30 = arith.constant 6 : index
    %c0_31 = arith.constant 0 : index
    %61 = vector.load %arg1[%c6_30, %c0_31] : memref<32x128xf32, #tpu.memory_space<vmem>>, vector<1x128xf32>
    %c14 = arith.constant 14 : index
    %c0_32 = arith.constant 0 : index
    %62 = vector.load %arg1[%c14, %c0_32] : memref<32x128xf32, #tpu.memory_space<vmem>>, vector<1x128xf32>
    %63 = vector.broadcast %60 : vector<8x1xf32> to vector<8x128xf32>
    %64 = vector.broadcast %61 : vector<1x128xf32> to vector<8x128xf32>
    %65 = arith.mulf %63, %64 : vector<8x128xf32>
    %66 = vector.broadcast %62 : vector<1x128xf32> to vector<8x128xf32>
    %67 = arith.addf %65, %66 : vector<8x128xf32>
    %cst_33 = arith.constant 0.000000e+00 : f32
    %68 = vector.broadcast %cst_33 : f32 to vector<8x128xf32>
    %69 = arith.maximumf %67, %68 : vector<8x128xf32>
    %c0_34 = arith.constant 0 : index
    %c7 = arith.constant 7 : index
    %70 = vector.load %arg2[%c0_34, %c7] : memref<8x8xf32, #tpu.memory_space<vmem>>, vector<8x1xf32>
    %c7_35 = arith.constant 7 : index
    %c0_36 = arith.constant 0 : index
    %71 = vector.load %arg1[%c7_35, %c0_36] : memref<32x128xf32, #tpu.memory_space<vmem>>, vector<1x128xf32>
    %c15 = arith.constant 15 : index
    %c0_37 = arith.constant 0 : index
    %72 = vector.load %arg1[%c15, %c0_37] : memref<32x128xf32, #tpu.memory_space<vmem>>, vector<1x128xf32>
    %73 = vector.broadcast %70 : vector<8x1xf32> to vector<8x128xf32>
    %74 = vector.broadcast %71 : vector<1x128xf32> to vector<8x128xf32>
    %75 = arith.mulf %73, %74 : vector<8x128xf32>
    %76 = vector.broadcast %72 : vector<1x128xf32> to vector<8x128xf32>
    %77 = arith.addf %75, %76 : vector<8x128xf32>
    %cst_38 = arith.constant 0.000000e+00 : f32
    %78 = vector.broadcast %cst_38 : f32 to vector<8x128xf32>
    %79 = arith.maximumf %77, %78 : vector<8x128xf32>
    %c0_39 = arith.constant 0 : index
    %c0_40 = arith.constant 0 : index
    %80 = memref.load %arg3[%c0_39, %c0_40] : memref<10x8xf32, #tpu.memory_space<smem>>
    %81 = vector.broadcast %80 : f32 to vector<8x128xf32>
    %82 = arith.mulf %9, %81 : vector<8x128xf32>
    %c0_41 = arith.constant 0 : index
    %c1_42 = arith.constant 1 : index
    %83 = memref.load %arg3[%c0_41, %c1_42] : memref<10x8xf32, #tpu.memory_space<smem>>
    %84 = vector.broadcast %83 : f32 to vector<8x128xf32>
    %85 = arith.mulf %19, %84 : vector<8x128xf32>
    %86 = arith.addf %82, %85 : vector<8x128xf32>
    %c0_43 = arith.constant 0 : index
    %c2_44 = arith.constant 2 : index
    %87 = memref.load %arg3[%c0_43, %c2_44] : memref<10x8xf32, #tpu.memory_space<smem>>
    %88 = vector.broadcast %87 : f32 to vector<8x128xf32>
    %89 = arith.mulf %29, %88 : vector<8x128xf32>
    %90 = arith.addf %86, %89 : vector<8x128xf32>
    %c0_45 = arith.constant 0 : index
    %c3_46 = arith.constant 3 : index
    %91 = memref.load %arg3[%c0_45, %c3_46] : memref<10x8xf32, #tpu.memory_space<smem>>
    %92 = vector.broadcast %91 : f32 to vector<8x128xf32>
    %93 = arith.mulf %39, %92 : vector<8x128xf32>
    %94 = arith.addf %90, %93 : vector<8x128xf32>
    %c0_47 = arith.constant 0 : index
    %c4_48 = arith.constant 4 : index
    %95 = memref.load %arg3[%c0_47, %c4_48] : memref<10x8xf32, #tpu.memory_space<smem>>
    %96 = vector.broadcast %95 : f32 to vector<8x128xf32>
    %97 = arith.mulf %49, %96 : vector<8x128xf32>
    %98 = arith.addf %94, %97 : vector<8x128xf32>
    %c0_49 = arith.constant 0 : index
    %c5_50 = arith.constant 5 : index
    %99 = memref.load %arg3[%c0_49, %c5_50] : memref<10x8xf32, #tpu.memory_space<smem>>
    %100 = vector.broadcast %99 : f32 to vector<8x128xf32>
    %101 = arith.mulf %59, %100 : vector<8x128xf32>
    %102 = arith.addf %98, %101 : vector<8x128xf32>
    %c0_51 = arith.constant 0 : index
    %c6_52 = arith.constant 6 : index
    %103 = memref.load %arg3[%c0_51, %c6_52] : memref<10x8xf32, #tpu.memory_space<smem>>
    %104 = vector.broadcast %103 : f32 to vector<8x128xf32>
    %105 = arith.mulf %69, %104 : vector<8x128xf32>
    %106 = arith.addf %102, %105 : vector<8x128xf32>
    %c0_53 = arith.constant 0 : index
    %c7_54 = arith.constant 7 : index
    %107 = memref.load %arg3[%c0_53, %c7_54] : memref<10x8xf32, #tpu.memory_space<smem>>
    %108 = vector.broadcast %107 : f32 to vector<8x128xf32>
    %109 = arith.mulf %79, %108 : vector<8x128xf32>
    %110 = arith.addf %106, %109 : vector<8x128xf32>
    %cst_55 = arith.constant dense<0.000000e+00> : vector<128xf32>
    %111 = vector.multi_reduction <add>, %110, %cst_55 [0] : vector<8x128xf32> to vector<128xf32>
    %112 = vector.shape_cast %111 : vector<128xf32> to vector<1x128xf32>
    %cst_56 = arith.constant 8.000000e+00 : f32
    %113 = vector.broadcast %cst_56 : f32 to vector<1x128xf32>
    %114 = arith.divf %112, %113 : vector<1x128xf32>
    %115 = vector.broadcast %114 : vector<1x128xf32> to vector<8x128xf32>
    %116 = arith.subf %110, %115 : vector<8x128xf32>
    %117 = arith.mulf %116, %116 : vector<8x128xf32>
    %cst_57 = arith.constant dense<0.000000e+00> : vector<128xf32>
    %118 = vector.multi_reduction <add>, %117, %cst_57 [0] : vector<8x128xf32> to vector<128xf32>
    %119 = vector.shape_cast %118 : vector<128xf32> to vector<1x128xf32>
    %cst_58 = arith.constant 8.000000e+00 : f32
    %120 = vector.broadcast %cst_58 : f32 to vector<1x128xf32>
    %121 = arith.divf %119, %120 : vector<1x128xf32>
    %cst_59 = arith.constant 9.99999974E-6 : f32
    %122 = vector.broadcast %cst_59 : f32 to vector<1x128xf32>
    %123 = arith.addf %121, %122 : vector<1x128xf32>
    %124 = math.rsqrt %123 : vector<1x128xf32>
    %125 = vector.broadcast %124 : vector<1x128xf32> to vector<8x128xf32>
    %126 = arith.mulf %116, %125 : vector<8x128xf32>
    %c16 = arith.constant 16 : index
    %c0_60 = arith.constant 0 : index
    %127 = vector.load %arg1[%c16, %c0_60] : memref<32x128xf32, #tpu.memory_space<vmem>>, vector<1x128xf32>
    %c24 = arith.constant 24 : index
    %c0_61 = arith.constant 0 : index
    %128 = vector.load %arg1[%c24, %c0_61] : memref<32x128xf32, #tpu.memory_space<vmem>>, vector<1x128xf32>
    %129 = vector.broadcast %127 : vector<1x128xf32> to vector<8x128xf32>
    %130 = arith.mulf %126, %129 : vector<8x128xf32>
    %131 = vector.broadcast %128 : vector<1x128xf32> to vector<8x128xf32>
    %132 = arith.addf %130, %131 : vector<8x128xf32>
    %cst_62 = arith.constant 0.000000e+00 : f32
    %133 = vector.broadcast %cst_62 : f32 to vector<8x128xf32>
    %134 = arith.maximumf %132, %133 : vector<8x128xf32>
    %c8_63 = arith.constant 8 : index
    %c0_64 = arith.constant 0 : index
    %135 = memref.load %arg3[%c8_63, %c0_64] : memref<10x8xf32, #tpu.memory_space<smem>>
    %136 = vector.broadcast %135 : f32 to vector<8x128xf32>
    %137 = arith.mulf %134, %136 : vector<8x128xf32>
    %c1_65 = arith.constant 1 : index
    %c0_66 = arith.constant 0 : index
    %138 = memref.load %arg3[%c1_65, %c0_66] : memref<10x8xf32, #tpu.memory_space<smem>>
    %139 = vector.broadcast %138 : f32 to vector<8x128xf32>
    %140 = arith.mulf %9, %139 : vector<8x128xf32>
    %c1_67 = arith.constant 1 : index
    %c1_68 = arith.constant 1 : index
    %141 = memref.load %arg3[%c1_67, %c1_68] : memref<10x8xf32, #tpu.memory_space<smem>>
    %142 = vector.broadcast %141 : f32 to vector<8x128xf32>
    %143 = arith.mulf %19, %142 : vector<8x128xf32>
    %144 = arith.addf %140, %143 : vector<8x128xf32>
    %c1_69 = arith.constant 1 : index
    %c2_70 = arith.constant 2 : index
    %145 = memref.load %arg3[%c1_69, %c2_70] : memref<10x8xf32, #tpu.memory_space<smem>>
    %146 = vector.broadcast %145 : f32 to vector<8x128xf32>
    %147 = arith.mulf %29, %146 : vector<8x128xf32>
    %148 = arith.addf %144, %147 : vector<8x128xf32>
    %c1_71 = arith.constant 1 : index
    %c3_72 = arith.constant 3 : index
    %149 = memref.load %arg3[%c1_71, %c3_72] : memref<10x8xf32, #tpu.memory_space<smem>>
    %150 = vector.broadcast %149 : f32 to vector<8x128xf32>
    %151 = arith.mulf %39, %150 : vector<8x128xf32>
    %152 = arith.addf %148, %151 : vector<8x128xf32>
    %c1_73 = arith.constant 1 : index
    %c4_74 = arith.constant 4 : index
    %153 = memref.load %arg3[%c1_73, %c4_74] : memref<10x8xf32, #tpu.memory_space<smem>>
    %154 = vector.broadcast %153 : f32 to vector<8x128xf32>
    %155 = arith.mulf %49, %154 : vector<8x128xf32>
    %156 = arith.addf %152, %155 : vector<8x128xf32>
    %c1_75 = arith.constant 1 : index
    %c5_76 = arith.constant 5 : index
    %157 = memref.load %arg3[%c1_75, %c5_76] : memref<10x8xf32, #tpu.memory_space<smem>>
    %158 = vector.broadcast %157 : f32 to vector<8x128xf32>
    %159 = arith.mulf %59, %158 : vector<8x128xf32>
    %160 = arith.addf %156, %159 : vector<8x128xf32>
    %c1_77 = arith.constant 1 : index
    %c6_78 = arith.constant 6 : index
    %161 = memref.load %arg3[%c1_77, %c6_78] : memref<10x8xf32, #tpu.memory_space<smem>>
    %162 = vector.broadcast %161 : f32 to vector<8x128xf32>
    %163 = arith.mulf %69, %162 : vector<8x128xf32>
    %164 = arith.addf %160, %163 : vector<8x128xf32>
    %c1_79 = arith.constant 1 : index
    %c7_80 = arith.constant 7 : index
    %165 = memref.load %arg3[%c1_79, %c7_80] : memref<10x8xf32, #tpu.memory_space<smem>>
    %166 = vector.broadcast %165 : f32 to vector<8x128xf32>
    %167 = arith.mulf %79, %166 : vector<8x128xf32>
    %168 = arith.addf %164, %167 : vector<8x128xf32>
    %cst_81 = arith.constant dense<0.000000e+00> : vector<128xf32>
    %169 = vector.multi_reduction <add>, %168, %cst_81 [0] : vector<8x128xf32> to vector<128xf32>
    %170 = vector.shape_cast %169 : vector<128xf32> to vector<1x128xf32>
    %cst_82 = arith.constant 8.000000e+00 : f32
    %171 = vector.broadcast %cst_82 : f32 to vector<1x128xf32>
    %172 = arith.divf %170, %171 : vector<1x128xf32>
    %173 = vector.broadcast %172 : vector<1x128xf32> to vector<8x128xf32>
    %174 = arith.subf %168, %173 : vector<8x128xf32>
    %175 = arith.mulf %174, %174 : vector<8x128xf32>
    %cst_83 = arith.constant dense<0.000000e+00> : vector<128xf32>
    %176 = vector.multi_reduction <add>, %175, %cst_83 [0] : vector<8x128xf32> to vector<128xf32>
    %177 = vector.shape_cast %176 : vector<128xf32> to vector<1x128xf32>
    %cst_84 = arith.constant 8.000000e+00 : f32
    %178 = vector.broadcast %cst_84 : f32 to vector<1x128xf32>
    %179 = arith.divf %177, %178 : vector<1x128xf32>
    %cst_85 = arith.constant 9.99999974E-6 : f32
    %180 = vector.broadcast %cst_85 : f32 to vector<1x128xf32>
    %181 = arith.addf %179, %180 : vector<1x128xf32>
    %182 = math.rsqrt %181 : vector<1x128xf32>
    %183 = vector.broadcast %182 : vector<1x128xf32> to vector<8x128xf32>
    %184 = arith.mulf %174, %183 : vector<8x128xf32>
    %c17 = arith.constant 17 : index
    %c0_86 = arith.constant 0 : index
    %185 = vector.load %arg1[%c17, %c0_86] : memref<32x128xf32, #tpu.memory_space<vmem>>, vector<1x128xf32>
    %c25 = arith.constant 25 : index
    %c0_87 = arith.constant 0 : index
    %186 = vector.load %arg1[%c25, %c0_87] : memref<32x128xf32, #tpu.memory_space<vmem>>, vector<1x128xf32>
    %187 = vector.broadcast %185 : vector<1x128xf32> to vector<8x128xf32>
    %188 = arith.mulf %184, %187 : vector<8x128xf32>
    %189 = vector.broadcast %186 : vector<1x128xf32> to vector<8x128xf32>
    %190 = arith.addf %188, %189 : vector<8x128xf32>
    %cst_88 = arith.constant 0.000000e+00 : f32
    %191 = vector.broadcast %cst_88 : f32 to vector<8x128xf32>
    %192 = arith.maximumf %190, %191 : vector<8x128xf32>
    %c8_89 = arith.constant 8 : index
    %c1_90 = arith.constant 1 : index
    %193 = memref.load %arg3[%c8_89, %c1_90] : memref<10x8xf32, #tpu.memory_space<smem>>
    %194 = vector.broadcast %193 : f32 to vector<8x128xf32>
    %195 = arith.mulf %192, %194 : vector<8x128xf32>
    %196 = arith.addf %137, %195 : vector<8x128xf32>
    %c2_91 = arith.constant 2 : index
    %c0_92 = arith.constant 0 : index
    %197 = memref.load %arg3[%c2_91, %c0_92] : memref<10x8xf32, #tpu.memory_space<smem>>
    %198 = vector.broadcast %197 : f32 to vector<8x128xf32>
    %199 = arith.mulf %9, %198 : vector<8x128xf32>
    %c2_93 = arith.constant 2 : index
    %c1_94 = arith.constant 1 : index
    %200 = memref.load %arg3[%c2_93, %c1_94] : memref<10x8xf32, #tpu.memory_space<smem>>
    %201 = vector.broadcast %200 : f32 to vector<8x128xf32>
    %202 = arith.mulf %19, %201 : vector<8x128xf32>
    %203 = arith.addf %199, %202 : vector<8x128xf32>
    %c2_95 = arith.constant 2 : index
    %c2_96 = arith.constant 2 : index
    %204 = memref.load %arg3[%c2_95, %c2_96] : memref<10x8xf32, #tpu.memory_space<smem>>
    %205 = vector.broadcast %204 : f32 to vector<8x128xf32>
    %206 = arith.mulf %29, %205 : vector<8x128xf32>
    %207 = arith.addf %203, %206 : vector<8x128xf32>
    %c2_97 = arith.constant 2 : index
    %c3_98 = arith.constant 3 : index
    %208 = memref.load %arg3[%c2_97, %c3_98] : memref<10x8xf32, #tpu.memory_space<smem>>
    %209 = vector.broadcast %208 : f32 to vector<8x128xf32>
    %210 = arith.mulf %39, %209 : vector<8x128xf32>
    %211 = arith.addf %207, %210 : vector<8x128xf32>
    %c2_99 = arith.constant 2 : index
    %c4_100 = arith.constant 4 : index
    %212 = memref.load %arg3[%c2_99, %c4_100] : memref<10x8xf32, #tpu.memory_space<smem>>
    %213 = vector.broadcast %212 : f32 to vector<8x128xf32>
    %214 = arith.mulf %49, %213 : vector<8x128xf32>
    %215 = arith.addf %211, %214 : vector<8x128xf32>
    %c2_101 = arith.constant 2 : index
    %c5_102 = arith.constant 5 : index
    %216 = memref.load %arg3[%c2_101, %c5_102] : memref<10x8xf32, #tpu.memory_space<smem>>
    %217 = vector.broadcast %216 : f32 to vector<8x128xf32>
    %218 = arith.mulf %59, %217 : vector<8x128xf32>
    %219 = arith.addf %215, %218 : vector<8x128xf32>
    %c2_103 = arith.constant 2 : index
    %c6_104 = arith.constant 6 : index
    %220 = memref.load %arg3[%c2_103, %c6_104] : memref<10x8xf32, #tpu.memory_space<smem>>
    %221 = vector.broadcast %220 : f32 to vector<8x128xf32>
    %222 = arith.mulf %69, %221 : vector<8x128xf32>
    %223 = arith.addf %219, %222 : vector<8x128xf32>
    %c2_105 = arith.constant 2 : index
    %c7_106 = arith.constant 7 : index
    %224 = memref.load %arg3[%c2_105, %c7_106] : memref<10x8xf32, #tpu.memory_space<smem>>
    %225 = vector.broadcast %224 : f32 to vector<8x128xf32>
    %226 = arith.mulf %79, %225 : vector<8x128xf32>
    %227 = arith.addf %223, %226 : vector<8x128xf32>
    %cst_107 = arith.constant dense<0.000000e+00> : vector<128xf32>
    %228 = vector.multi_reduction <add>, %227, %cst_107 [0] : vector<8x128xf32> to vector<128xf32>
    %229 = vector.shape_cast %228 : vector<128xf32> to vector<1x128xf32>
    %cst_108 = arith.constant 8.000000e+00 : f32
    %230 = vector.broadcast %cst_108 : f32 to vector<1x128xf32>
    %231 = arith.divf %229, %230 : vector<1x128xf32>
    %232 = vector.broadcast %231 : vector<1x128xf32> to vector<8x128xf32>
    %233 = arith.subf %227, %232 : vector<8x128xf32>
    %234 = arith.mulf %233, %233 : vector<8x128xf32>
    %cst_109 = arith.constant dense<0.000000e+00> : vector<128xf32>
    %235 = vector.multi_reduction <add>, %234, %cst_109 [0] : vector<8x128xf32> to vector<128xf32>
    %236 = vector.shape_cast %235 : vector<128xf32> to vector<1x128xf32>
    %cst_110 = arith.constant 8.000000e+00 : f32
    %237 = vector.broadcast %cst_110 : f32 to vector<1x128xf32>
    %238 = arith.divf %236, %237 : vector<1x128xf32>
    %cst_111 = arith.constant 9.99999974E-6 : f32
    %239 = vector.broadcast %cst_111 : f32 to vector<1x128xf32>
    %240 = arith.addf %238, %239 : vector<1x128xf32>
    %241 = math.rsqrt %240 : vector<1x128xf32>
    %242 = vector.broadcast %241 : vector<1x128xf32> to vector<8x128xf32>
    %243 = arith.mulf %233, %242 : vector<8x128xf32>
    %c18 = arith.constant 18 : index
    %c0_112 = arith.constant 0 : index
    %244 = vector.load %arg1[%c18, %c0_112] : memref<32x128xf32, #tpu.memory_space<vmem>>, vector<1x128xf32>
    %c26 = arith.constant 26 : index
    %c0_113 = arith.constant 0 : index
    %245 = vector.load %arg1[%c26, %c0_113] : memref<32x128xf32, #tpu.memory_space<vmem>>, vector<1x128xf32>
    %246 = vector.broadcast %244 : vector<1x128xf32> to vector<8x128xf32>
    %247 = arith.mulf %243, %246 : vector<8x128xf32>
    %248 = vector.broadcast %245 : vector<1x128xf32> to vector<8x128xf32>
    %249 = arith.addf %247, %248 : vector<8x128xf32>
    %cst_114 = arith.constant 0.000000e+00 : f32
    %250 = vector.broadcast %cst_114 : f32 to vector<8x128xf32>
    %251 = arith.maximumf %249, %250 : vector<8x128xf32>
    %c8_115 = arith.constant 8 : index
    %c2_116 = arith.constant 2 : index
    %252 = memref.load %arg3[%c8_115, %c2_116] : memref<10x8xf32, #tpu.memory_space<smem>>
    %253 = vector.broadcast %252 : f32 to vector<8x128xf32>
    %254 = arith.mulf %251, %253 : vector<8x128xf32>
    %255 = arith.addf %196, %254 : vector<8x128xf32>
    %c3_117 = arith.constant 3 : index
    %c0_118 = arith.constant 0 : index
    %256 = memref.load %arg3[%c3_117, %c0_118] : memref<10x8xf32, #tpu.memory_space<smem>>
    %257 = vector.broadcast %256 : f32 to vector<8x128xf32>
    %258 = arith.mulf %9, %257 : vector<8x128xf32>
    %c3_119 = arith.constant 3 : index
    %c1_120 = arith.constant 1 : index
    %259 = memref.load %arg3[%c3_119, %c1_120] : memref<10x8xf32, #tpu.memory_space<smem>>
    %260 = vector.broadcast %259 : f32 to vector<8x128xf32>
    %261 = arith.mulf %19, %260 : vector<8x128xf32>
    %262 = arith.addf %258, %261 : vector<8x128xf32>
    %c3_121 = arith.constant 3 : index
    %c2_122 = arith.constant 2 : index
    %263 = memref.load %arg3[%c3_121, %c2_122] : memref<10x8xf32, #tpu.memory_space<smem>>
    %264 = vector.broadcast %263 : f32 to vector<8x128xf32>
    %265 = arith.mulf %29, %264 : vector<8x128xf32>
    %266 = arith.addf %262, %265 : vector<8x128xf32>
    %c3_123 = arith.constant 3 : index
    %c3_124 = arith.constant 3 : index
    %267 = memref.load %arg3[%c3_123, %c3_124] : memref<10x8xf32, #tpu.memory_space<smem>>
    %268 = vector.broadcast %267 : f32 to vector<8x128xf32>
    %269 = arith.mulf %39, %268 : vector<8x128xf32>
    %270 = arith.addf %266, %269 : vector<8x128xf32>
    %c3_125 = arith.constant 3 : index
    %c4_126 = arith.constant 4 : index
    %271 = memref.load %arg3[%c3_125, %c4_126] : memref<10x8xf32, #tpu.memory_space<smem>>
    %272 = vector.broadcast %271 : f32 to vector<8x128xf32>
    %273 = arith.mulf %49, %272 : vector<8x128xf32>
    %274 = arith.addf %270, %273 : vector<8x128xf32>
    %c3_127 = arith.constant 3 : index
    %c5_128 = arith.constant 5 : index
    %275 = memref.load %arg3[%c3_127, %c5_128] : memref<10x8xf32, #tpu.memory_space<smem>>
    %276 = vector.broadcast %275 : f32 to vector<8x128xf32>
    %277 = arith.mulf %59, %276 : vector<8x128xf32>
    %278 = arith.addf %274, %277 : vector<8x128xf32>
    %c3_129 = arith.constant 3 : index
    %c6_130 = arith.constant 6 : index
    %279 = memref.load %arg3[%c3_129, %c6_130] : memref<10x8xf32, #tpu.memory_space<smem>>
    %280 = vector.broadcast %279 : f32 to vector<8x128xf32>
    %281 = arith.mulf %69, %280 : vector<8x128xf32>
    %282 = arith.addf %278, %281 : vector<8x128xf32>
    %c3_131 = arith.constant 3 : index
    %c7_132 = arith.constant 7 : index
    %283 = memref.load %arg3[%c3_131, %c7_132] : memref<10x8xf32, #tpu.memory_space<smem>>
    %284 = vector.broadcast %283 : f32 to vector<8x128xf32>
    %285 = arith.mulf %79, %284 : vector<8x128xf32>
    %286 = arith.addf %282, %285 : vector<8x128xf32>
    %cst_133 = arith.constant dense<0.000000e+00> : vector<128xf32>
    %287 = vector.multi_reduction <add>, %286, %cst_133 [0] : vector<8x128xf32> to vector<128xf32>
    %288 = vector.shape_cast %287 : vector<128xf32> to vector<1x128xf32>
    %cst_134 = arith.constant 8.000000e+00 : f32
    %289 = vector.broadcast %cst_134 : f32 to vector<1x128xf32>
    %290 = arith.divf %288, %289 : vector<1x128xf32>
    %291 = vector.broadcast %290 : vector<1x128xf32> to vector<8x128xf32>
    %292 = arith.subf %286, %291 : vector<8x128xf32>
    %293 = arith.mulf %292, %292 : vector<8x128xf32>
    %cst_135 = arith.constant dense<0.000000e+00> : vector<128xf32>
    %294 = vector.multi_reduction <add>, %293, %cst_135 [0] : vector<8x128xf32> to vector<128xf32>
    %295 = vector.shape_cast %294 : vector<128xf32> to vector<1x128xf32>
    %cst_136 = arith.constant 8.000000e+00 : f32
    %296 = vector.broadcast %cst_136 : f32 to vector<1x128xf32>
    %297 = arith.divf %295, %296 : vector<1x128xf32>
    %cst_137 = arith.constant 9.99999974E-6 : f32
    %298 = vector.broadcast %cst_137 : f32 to vector<1x128xf32>
    %299 = arith.addf %297, %298 : vector<1x128xf32>
    %300 = math.rsqrt %299 : vector<1x128xf32>
    %301 = vector.broadcast %300 : vector<1x128xf32> to vector<8x128xf32>
    %302 = arith.mulf %292, %301 : vector<8x128xf32>
    %c19 = arith.constant 19 : index
    %c0_138 = arith.constant 0 : index
    %303 = vector.load %arg1[%c19, %c0_138] : memref<32x128xf32, #tpu.memory_space<vmem>>, vector<1x128xf32>
    %c27 = arith.constant 27 : index
    %c0_139 = arith.constant 0 : index
    %304 = vector.load %arg1[%c27, %c0_139] : memref<32x128xf32, #tpu.memory_space<vmem>>, vector<1x128xf32>
    %305 = vector.broadcast %303 : vector<1x128xf32> to vector<8x128xf32>
    %306 = arith.mulf %302, %305 : vector<8x128xf32>
    %307 = vector.broadcast %304 : vector<1x128xf32> to vector<8x128xf32>
    %308 = arith.addf %306, %307 : vector<8x128xf32>
    %cst_140 = arith.constant 0.000000e+00 : f32
    %309 = vector.broadcast %cst_140 : f32 to vector<8x128xf32>
    %310 = arith.maximumf %308, %309 : vector<8x128xf32>
    %c8_141 = arith.constant 8 : index
    %c3_142 = arith.constant 3 : index
    %311 = memref.load %arg3[%c8_141, %c3_142] : memref<10x8xf32, #tpu.memory_space<smem>>
    %312 = vector.broadcast %311 : f32 to vector<8x128xf32>
    %313 = arith.mulf %310, %312 : vector<8x128xf32>
    %314 = arith.addf %255, %313 : vector<8x128xf32>
    %c4_143 = arith.constant 4 : index
    %c0_144 = arith.constant 0 : index
    %315 = memref.load %arg3[%c4_143, %c0_144] : memref<10x8xf32, #tpu.memory_space<smem>>
    %316 = vector.broadcast %315 : f32 to vector<8x128xf32>
    %317 = arith.mulf %9, %316 : vector<8x128xf32>
    %c4_145 = arith.constant 4 : index
    %c1_146 = arith.constant 1 : index
    %318 = memref.load %arg3[%c4_145, %c1_146] : memref<10x8xf32, #tpu.memory_space<smem>>
    %319 = vector.broadcast %318 : f32 to vector<8x128xf32>
    %320 = arith.mulf %19, %319 : vector<8x128xf32>
    %321 = arith.addf %317, %320 : vector<8x128xf32>
    %c4_147 = arith.constant 4 : index
    %c2_148 = arith.constant 2 : index
    %322 = memref.load %arg3[%c4_147, %c2_148] : memref<10x8xf32, #tpu.memory_space<smem>>
    %323 = vector.broadcast %322 : f32 to vector<8x128xf32>
    %324 = arith.mulf %29, %323 : vector<8x128xf32>
    %325 = arith.addf %321, %324 : vector<8x128xf32>
    %c4_149 = arith.constant 4 : index
    %c3_150 = arith.constant 3 : index
    %326 = memref.load %arg3[%c4_149, %c3_150] : memref<10x8xf32, #tpu.memory_space<smem>>
    %327 = vector.broadcast %326 : f32 to vector<8x128xf32>
    %328 = arith.mulf %39, %327 : vector<8x128xf32>
    %329 = arith.addf %325, %328 : vector<8x128xf32>
    %c4_151 = arith.constant 4 : index
    %c4_152 = arith.constant 4 : index
    %330 = memref.load %arg3[%c4_151, %c4_152] : memref<10x8xf32, #tpu.memory_space<smem>>
    %331 = vector.broadcast %330 : f32 to vector<8x128xf32>
    %332 = arith.mulf %49, %331 : vector<8x128xf32>
    %333 = arith.addf %329, %332 : vector<8x128xf32>
    %c4_153 = arith.constant 4 : index
    %c5_154 = arith.constant 5 : index
    %334 = memref.load %arg3[%c4_153, %c5_154] : memref<10x8xf32, #tpu.memory_space<smem>>
    %335 = vector.broadcast %334 : f32 to vector<8x128xf32>
    %336 = arith.mulf %59, %335 : vector<8x128xf32>
    %337 = arith.addf %333, %336 : vector<8x128xf32>
    %c4_155 = arith.constant 4 : index
    %c6_156 = arith.constant 6 : index
    %338 = memref.load %arg3[%c4_155, %c6_156] : memref<10x8xf32, #tpu.memory_space<smem>>
    %339 = vector.broadcast %338 : f32 to vector<8x128xf32>
    %340 = arith.mulf %69, %339 : vector<8x128xf32>
    %341 = arith.addf %337, %340 : vector<8x128xf32>
    %c4_157 = arith.constant 4 : index
    %c7_158 = arith.constant 7 : index
    %342 = memref.load %arg3[%c4_157, %c7_158] : memref<10x8xf32, #tpu.memory_space<smem>>
    %343 = vector.broadcast %342 : f32 to vector<8x128xf32>
    %344 = arith.mulf %79, %343 : vector<8x128xf32>
    %345 = arith.addf %341, %344 : vector<8x128xf32>
    %cst_159 = arith.constant dense<0.000000e+00> : vector<128xf32>
    %346 = vector.multi_reduction <add>, %345, %cst_159 [0] : vector<8x128xf32> to vector<128xf32>
    %347 = vector.shape_cast %346 : vector<128xf32> to vector<1x128xf32>
    %cst_160 = arith.constant 8.000000e+00 : f32
    %348 = vector.broadcast %cst_160 : f32 to vector<1x128xf32>
    %349 = arith.divf %347, %348 : vector<1x128xf32>
    %350 = vector.broadcast %349 : vector<1x128xf32> to vector<8x128xf32>
    %351 = arith.subf %345, %350 : vector<8x128xf32>
    %352 = arith.mulf %351, %351 : vector<8x128xf32>
    %cst_161 = arith.constant dense<0.000000e+00> : vector<128xf32>
    %353 = vector.multi_reduction <add>, %352, %cst_161 [0] : vector<8x128xf32> to vector<128xf32>
    %354 = vector.shape_cast %353 : vector<128xf32> to vector<1x128xf32>
    %cst_162 = arith.constant 8.000000e+00 : f32
    %355 = vector.broadcast %cst_162 : f32 to vector<1x128xf32>
    %356 = arith.divf %354, %355 : vector<1x128xf32>
    %cst_163 = arith.constant 9.99999974E-6 : f32
    %357 = vector.broadcast %cst_163 : f32 to vector<1x128xf32>
    %358 = arith.addf %356, %357 : vector<1x128xf32>
    %359 = math.rsqrt %358 : vector<1x128xf32>
    %360 = vector.broadcast %359 : vector<1x128xf32> to vector<8x128xf32>
    %361 = arith.mulf %351, %360 : vector<8x128xf32>
    %c20 = arith.constant 20 : index
    %c0_164 = arith.constant 0 : index
    %362 = vector.load %arg1[%c20, %c0_164] : memref<32x128xf32, #tpu.memory_space<vmem>>, vector<1x128xf32>
    %c28 = arith.constant 28 : index
    %c0_165 = arith.constant 0 : index
    %363 = vector.load %arg1[%c28, %c0_165] : memref<32x128xf32, #tpu.memory_space<vmem>>, vector<1x128xf32>
    %364 = vector.broadcast %362 : vector<1x128xf32> to vector<8x128xf32>
    %365 = arith.mulf %361, %364 : vector<8x128xf32>
    %366 = vector.broadcast %363 : vector<1x128xf32> to vector<8x128xf32>
    %367 = arith.addf %365, %366 : vector<8x128xf32>
    %cst_166 = arith.constant 0.000000e+00 : f32
    %368 = vector.broadcast %cst_166 : f32 to vector<8x128xf32>
    %369 = arith.maximumf %367, %368 : vector<8x128xf32>
    %c8_167 = arith.constant 8 : index
    %c4_168 = arith.constant 4 : index
    %370 = memref.load %arg3[%c8_167, %c4_168] : memref<10x8xf32, #tpu.memory_space<smem>>
    %371 = vector.broadcast %370 : f32 to vector<8x128xf32>
    %372 = arith.mulf %369, %371 : vector<8x128xf32>
    %373 = arith.addf %314, %372 : vector<8x128xf32>
    %c5_169 = arith.constant 5 : index
    %c0_170 = arith.constant 0 : index
    %374 = memref.load %arg3[%c5_169, %c0_170] : memref<10x8xf32, #tpu.memory_space<smem>>
    %375 = vector.broadcast %374 : f32 to vector<8x128xf32>
    %376 = arith.mulf %9, %375 : vector<8x128xf32>
    %c5_171 = arith.constant 5 : index
    %c1_172 = arith.constant 1 : index
    %377 = memref.load %arg3[%c5_171, %c1_172] : memref<10x8xf32, #tpu.memory_space<smem>>
    %378 = vector.broadcast %377 : f32 to vector<8x128xf32>
    %379 = arith.mulf %19, %378 : vector<8x128xf32>
    %380 = arith.addf %376, %379 : vector<8x128xf32>
    %c5_173 = arith.constant 5 : index
    %c2_174 = arith.constant 2 : index
    %381 = memref.load %arg3[%c5_173, %c2_174] : memref<10x8xf32, #tpu.memory_space<smem>>
    %382 = vector.broadcast %381 : f32 to vector<8x128xf32>
    %383 = arith.mulf %29, %382 : vector<8x128xf32>
    %384 = arith.addf %380, %383 : vector<8x128xf32>
    %c5_175 = arith.constant 5 : index
    %c3_176 = arith.constant 3 : index
    %385 = memref.load %arg3[%c5_175, %c3_176] : memref<10x8xf32, #tpu.memory_space<smem>>
    %386 = vector.broadcast %385 : f32 to vector<8x128xf32>
    %387 = arith.mulf %39, %386 : vector<8x128xf32>
    %388 = arith.addf %384, %387 : vector<8x128xf32>
    %c5_177 = arith.constant 5 : index
    %c4_178 = arith.constant 4 : index
    %389 = memref.load %arg3[%c5_177, %c4_178] : memref<10x8xf32, #tpu.memory_space<smem>>
    %390 = vector.broadcast %389 : f32 to vector<8x128xf32>
    %391 = arith.mulf %49, %390 : vector<8x128xf32>
    %392 = arith.addf %388, %391 : vector<8x128xf32>
    %c5_179 = arith.constant 5 : index
    %c5_180 = arith.constant 5 : index
    %393 = memref.load %arg3[%c5_179, %c5_180] : memref<10x8xf32, #tpu.memory_space<smem>>
    %394 = vector.broadcast %393 : f32 to vector<8x128xf32>
    %395 = arith.mulf %59, %394 : vector<8x128xf32>
    %396 = arith.addf %392, %395 : vector<8x128xf32>
    %c5_181 = arith.constant 5 : index
    %c6_182 = arith.constant 6 : index
    %397 = memref.load %arg3[%c5_181, %c6_182] : memref<10x8xf32, #tpu.memory_space<smem>>
    %398 = vector.broadcast %397 : f32 to vector<8x128xf32>
    %399 = arith.mulf %69, %398 : vector<8x128xf32>
    %400 = arith.addf %396, %399 : vector<8x128xf32>
    %c5_183 = arith.constant 5 : index
    %c7_184 = arith.constant 7 : index
    %401 = memref.load %arg3[%c5_183, %c7_184] : memref<10x8xf32, #tpu.memory_space<smem>>
    %402 = vector.broadcast %401 : f32 to vector<8x128xf32>
    %403 = arith.mulf %79, %402 : vector<8x128xf32>
    %404 = arith.addf %400, %403 : vector<8x128xf32>
    %cst_185 = arith.constant dense<0.000000e+00> : vector<128xf32>
    %405 = vector.multi_reduction <add>, %404, %cst_185 [0] : vector<8x128xf32> to vector<128xf32>
    %406 = vector.shape_cast %405 : vector<128xf32> to vector<1x128xf32>
    %cst_186 = arith.constant 8.000000e+00 : f32
    %407 = vector.broadcast %cst_186 : f32 to vector<1x128xf32>
    %408 = arith.divf %406, %407 : vector<1x128xf32>
    %409 = vector.broadcast %408 : vector<1x128xf32> to vector<8x128xf32>
    %410 = arith.subf %404, %409 : vector<8x128xf32>
    %411 = arith.mulf %410, %410 : vector<8x128xf32>
    %cst_187 = arith.constant dense<0.000000e+00> : vector<128xf32>
    %412 = vector.multi_reduction <add>, %411, %cst_187 [0] : vector<8x128xf32> to vector<128xf32>
    %413 = vector.shape_cast %412 : vector<128xf32> to vector<1x128xf32>
    %cst_188 = arith.constant 8.000000e+00 : f32
    %414 = vector.broadcast %cst_188 : f32 to vector<1x128xf32>
    %415 = arith.divf %413, %414 : vector<1x128xf32>
    %cst_189 = arith.constant 9.99999974E-6 : f32
    %416 = vector.broadcast %cst_189 : f32 to vector<1x128xf32>
    %417 = arith.addf %415, %416 : vector<1x128xf32>
    %418 = math.rsqrt %417 : vector<1x128xf32>
    %419 = vector.broadcast %418 : vector<1x128xf32> to vector<8x128xf32>
    %420 = arith.mulf %410, %419 : vector<8x128xf32>
    %c21 = arith.constant 21 : index
    %c0_190 = arith.constant 0 : index
    %421 = vector.load %arg1[%c21, %c0_190] : memref<32x128xf32, #tpu.memory_space<vmem>>, vector<1x128xf32>
    %c29 = arith.constant 29 : index
    %c0_191 = arith.constant 0 : index
    %422 = vector.load %arg1[%c29, %c0_191] : memref<32x128xf32, #tpu.memory_space<vmem>>, vector<1x128xf32>
    %423 = vector.broadcast %421 : vector<1x128xf32> to vector<8x128xf32>
    %424 = arith.mulf %420, %423 : vector<8x128xf32>
    %425 = vector.broadcast %422 : vector<1x128xf32> to vector<8x128xf32>
    %426 = arith.addf %424, %425 : vector<8x128xf32>
    %cst_192 = arith.constant 0.000000e+00 : f32
    %427 = vector.broadcast %cst_192 : f32 to vector<8x128xf32>
    %428 = arith.maximumf %426, %427 : vector<8x128xf32>
    %c8_193 = arith.constant 8 : index
    %c5_194 = arith.constant 5 : index
    %429 = memref.load %arg3[%c8_193, %c5_194] : memref<10x8xf32, #tpu.memory_space<smem>>
    %430 = vector.broadcast %429 : f32 to vector<8x128xf32>
    %431 = arith.mulf %428, %430 : vector<8x128xf32>
    %432 = arith.addf %373, %431 : vector<8x128xf32>
    %c6_195 = arith.constant 6 : index
    %c0_196 = arith.constant 0 : index
    %433 = memref.load %arg3[%c6_195, %c0_196] : memref<10x8xf32, #tpu.memory_space<smem>>
    %434 = vector.broadcast %433 : f32 to vector<8x128xf32>
    %435 = arith.mulf %9, %434 : vector<8x128xf32>
    %c6_197 = arith.constant 6 : index
    %c1_198 = arith.constant 1 : index
    %436 = memref.load %arg3[%c6_197, %c1_198] : memref<10x8xf32, #tpu.memory_space<smem>>
    %437 = vector.broadcast %436 : f32 to vector<8x128xf32>
    %438 = arith.mulf %19, %437 : vector<8x128xf32>
    %439 = arith.addf %435, %438 : vector<8x128xf32>
    %c6_199 = arith.constant 6 : index
    %c2_200 = arith.constant 2 : index
    %440 = memref.load %arg3[%c6_199, %c2_200] : memref<10x8xf32, #tpu.memory_space<smem>>
    %441 = vector.broadcast %440 : f32 to vector<8x128xf32>
    %442 = arith.mulf %29, %441 : vector<8x128xf32>
    %443 = arith.addf %439, %442 : vector<8x128xf32>
    %c6_201 = arith.constant 6 : index
    %c3_202 = arith.constant 3 : index
    %444 = memref.load %arg3[%c6_201, %c3_202] : memref<10x8xf32, #tpu.memory_space<smem>>
    %445 = vector.broadcast %444 : f32 to vector<8x128xf32>
    %446 = arith.mulf %39, %445 : vector<8x128xf32>
    %447 = arith.addf %443, %446 : vector<8x128xf32>
    %c6_203 = arith.constant 6 : index
    %c4_204 = arith.constant 4 : index
    %448 = memref.load %arg3[%c6_203, %c4_204] : memref<10x8xf32, #tpu.memory_space<smem>>
    %449 = vector.broadcast %448 : f32 to vector<8x128xf32>
    %450 = arith.mulf %49, %449 : vector<8x128xf32>
    %451 = arith.addf %447, %450 : vector<8x128xf32>
    %c6_205 = arith.constant 6 : index
    %c5_206 = arith.constant 5 : index
    %452 = memref.load %arg3[%c6_205, %c5_206] : memref<10x8xf32, #tpu.memory_space<smem>>
    %453 = vector.broadcast %452 : f32 to vector<8x128xf32>
    %454 = arith.mulf %59, %453 : vector<8x128xf32>
    %455 = arith.addf %451, %454 : vector<8x128xf32>
    %c6_207 = arith.constant 6 : index
    %c6_208 = arith.constant 6 : index
    %456 = memref.load %arg3[%c6_207, %c6_208] : memref<10x8xf32, #tpu.memory_space<smem>>
    %457 = vector.broadcast %456 : f32 to vector<8x128xf32>
    %458 = arith.mulf %69, %457 : vector<8x128xf32>
    %459 = arith.addf %455, %458 : vector<8x128xf32>
    %c6_209 = arith.constant 6 : index
    %c7_210 = arith.constant 7 : index
    %460 = memref.load %arg3[%c6_209, %c7_210] : memref<10x8xf32, #tpu.memory_space<smem>>
    %461 = vector.broadcast %460 : f32 to vector<8x128xf32>
    %462 = arith.mulf %79, %461 : vector<8x128xf32>
    %463 = arith.addf %459, %462 : vector<8x128xf32>
    %cst_211 = arith.constant dense<0.000000e+00> : vector<128xf32>
    %464 = vector.multi_reduction <add>, %463, %cst_211 [0] : vector<8x128xf32> to vector<128xf32>
    %465 = vector.shape_cast %464 : vector<128xf32> to vector<1x128xf32>
    %cst_212 = arith.constant 8.000000e+00 : f32
    %466 = vector.broadcast %cst_212 : f32 to vector<1x128xf32>
    %467 = arith.divf %465, %466 : vector<1x128xf32>
    %468 = vector.broadcast %467 : vector<1x128xf32> to vector<8x128xf32>
    %469 = arith.subf %463, %468 : vector<8x128xf32>
    %470 = arith.mulf %469, %469 : vector<8x128xf32>
    %cst_213 = arith.constant dense<0.000000e+00> : vector<128xf32>
    %471 = vector.multi_reduction <add>, %470, %cst_213 [0] : vector<8x128xf32> to vector<128xf32>
    %472 = vector.shape_cast %471 : vector<128xf32> to vector<1x128xf32>
    %cst_214 = arith.constant 8.000000e+00 : f32
    %473 = vector.broadcast %cst_214 : f32 to vector<1x128xf32>
    %474 = arith.divf %472, %473 : vector<1x128xf32>
    %cst_215 = arith.constant 9.99999974E-6 : f32
    %475 = vector.broadcast %cst_215 : f32 to vector<1x128xf32>
    %476 = arith.addf %474, %475 : vector<1x128xf32>
    %477 = math.rsqrt %476 : vector<1x128xf32>
    %478 = vector.broadcast %477 : vector<1x128xf32> to vector<8x128xf32>
    %479 = arith.mulf %469, %478 : vector<8x128xf32>
    %c22 = arith.constant 22 : index
    %c0_216 = arith.constant 0 : index
    %480 = vector.load %arg1[%c22, %c0_216] : memref<32x128xf32, #tpu.memory_space<vmem>>, vector<1x128xf32>
    %c30 = arith.constant 30 : index
    %c0_217 = arith.constant 0 : index
    %481 = vector.load %arg1[%c30, %c0_217] : memref<32x128xf32, #tpu.memory_space<vmem>>, vector<1x128xf32>
    %482 = vector.broadcast %480 : vector<1x128xf32> to vector<8x128xf32>
    %483 = arith.mulf %479, %482 : vector<8x128xf32>
    %484 = vector.broadcast %481 : vector<1x128xf32> to vector<8x128xf32>
    %485 = arith.addf %483, %484 : vector<8x128xf32>
    %cst_218 = arith.constant 0.000000e+00 : f32
    %486 = vector.broadcast %cst_218 : f32 to vector<8x128xf32>
    %487 = arith.maximumf %485, %486 : vector<8x128xf32>
    %c8_219 = arith.constant 8 : index
    %c6_220 = arith.constant 6 : index
    %488 = memref.load %arg3[%c8_219, %c6_220] : memref<10x8xf32, #tpu.memory_space<smem>>
    %489 = vector.broadcast %488 : f32 to vector<8x128xf32>
    %490 = arith.mulf %487, %489 : vector<8x128xf32>
    %491 = arith.addf %432, %490 : vector<8x128xf32>
    %c7_221 = arith.constant 7 : index
    %c0_222 = arith.constant 0 : index
    %492 = memref.load %arg3[%c7_221, %c0_222] : memref<10x8xf32, #tpu.memory_space<smem>>
    %493 = vector.broadcast %492 : f32 to vector<8x128xf32>
    %494 = arith.mulf %9, %493 : vector<8x128xf32>
    %c7_223 = arith.constant 7 : index
    %c1_224 = arith.constant 1 : index
    %495 = memref.load %arg3[%c7_223, %c1_224] : memref<10x8xf32, #tpu.memory_space<smem>>
    %496 = vector.broadcast %495 : f32 to vector<8x128xf32>
    %497 = arith.mulf %19, %496 : vector<8x128xf32>
    %498 = arith.addf %494, %497 : vector<8x128xf32>
    %c7_225 = arith.constant 7 : index
    %c2_226 = arith.constant 2 : index
    %499 = memref.load %arg3[%c7_225, %c2_226] : memref<10x8xf32, #tpu.memory_space<smem>>
    %500 = vector.broadcast %499 : f32 to vector<8x128xf32>
    %501 = arith.mulf %29, %500 : vector<8x128xf32>
    %502 = arith.addf %498, %501 : vector<8x128xf32>
    %c7_227 = arith.constant 7 : index
    %c3_228 = arith.constant 3 : index
    %503 = memref.load %arg3[%c7_227, %c3_228] : memref<10x8xf32, #tpu.memory_space<smem>>
    %504 = vector.broadcast %503 : f32 to vector<8x128xf32>
    %505 = arith.mulf %39, %504 : vector<8x128xf32>
    %506 = arith.addf %502, %505 : vector<8x128xf32>
    %c7_229 = arith.constant 7 : index
    %c4_230 = arith.constant 4 : index
    %507 = memref.load %arg3[%c7_229, %c4_230] : memref<10x8xf32, #tpu.memory_space<smem>>
    %508 = vector.broadcast %507 : f32 to vector<8x128xf32>
    %509 = arith.mulf %49, %508 : vector<8x128xf32>
    %510 = arith.addf %506, %509 : vector<8x128xf32>
    %c7_231 = arith.constant 7 : index
    %c5_232 = arith.constant 5 : index
    %511 = memref.load %arg3[%c7_231, %c5_232] : memref<10x8xf32, #tpu.memory_space<smem>>
    %512 = vector.broadcast %511 : f32 to vector<8x128xf32>
    %513 = arith.mulf %59, %512 : vector<8x128xf32>
    %514 = arith.addf %510, %513 : vector<8x128xf32>
    %c7_233 = arith.constant 7 : index
    %c6_234 = arith.constant 6 : index
    %515 = memref.load %arg3[%c7_233, %c6_234] : memref<10x8xf32, #tpu.memory_space<smem>>
    %516 = vector.broadcast %515 : f32 to vector<8x128xf32>
    %517 = arith.mulf %69, %516 : vector<8x128xf32>
    %518 = arith.addf %514, %517 : vector<8x128xf32>
    %c7_235 = arith.constant 7 : index
    %c7_236 = arith.constant 7 : index
    %519 = memref.load %arg3[%c7_235, %c7_236] : memref<10x8xf32, #tpu.memory_space<smem>>
    %520 = vector.broadcast %519 : f32 to vector<8x128xf32>
    %521 = arith.mulf %79, %520 : vector<8x128xf32>
    %522 = arith.addf %518, %521 : vector<8x128xf32>
    %cst_237 = arith.constant dense<0.000000e+00> : vector<128xf32>
    %523 = vector.multi_reduction <add>, %522, %cst_237 [0] : vector<8x128xf32> to vector<128xf32>
    %524 = vector.shape_cast %523 : vector<128xf32> to vector<1x128xf32>
    %cst_238 = arith.constant 8.000000e+00 : f32
    %525 = vector.broadcast %cst_238 : f32 to vector<1x128xf32>
    %526 = arith.divf %524, %525 : vector<1x128xf32>
    %527 = vector.broadcast %526 : vector<1x128xf32> to vector<8x128xf32>
    %528 = arith.subf %522, %527 : vector<8x128xf32>
    %529 = arith.mulf %528, %528 : vector<8x128xf32>
    %cst_239 = arith.constant dense<0.000000e+00> : vector<128xf32>
    %530 = vector.multi_reduction <add>, %529, %cst_239 [0] : vector<8x128xf32> to vector<128xf32>
    %531 = vector.shape_cast %530 : vector<128xf32> to vector<1x128xf32>
    %cst_240 = arith.constant 8.000000e+00 : f32
    %532 = vector.broadcast %cst_240 : f32 to vector<1x128xf32>
    %533 = arith.divf %531, %532 : vector<1x128xf32>
    %cst_241 = arith.constant 9.99999974E-6 : f32
    %534 = vector.broadcast %cst_241 : f32 to vector<1x128xf32>
    %535 = arith.addf %533, %534 : vector<1x128xf32>
    %536 = math.rsqrt %535 : vector<1x128xf32>
    %537 = vector.broadcast %536 : vector<1x128xf32> to vector<8x128xf32>
    %538 = arith.mulf %528, %537 : vector<8x128xf32>
    %c23 = arith.constant 23 : index
    %c0_242 = arith.constant 0 : index
    %539 = vector.load %arg1[%c23, %c0_242] : memref<32x128xf32, #tpu.memory_space<vmem>>, vector<1x128xf32>
    %c31 = arith.constant 31 : index
    %c0_243 = arith.constant 0 : index
    %540 = vector.load %arg1[%c31, %c0_243] : memref<32x128xf32, #tpu.memory_space<vmem>>, vector<1x128xf32>
    %541 = vector.broadcast %539 : vector<1x128xf32> to vector<8x128xf32>
    %542 = arith.mulf %538, %541 : vector<8x128xf32>
    %543 = vector.broadcast %540 : vector<1x128xf32> to vector<8x128xf32>
    %544 = arith.addf %542, %543 : vector<8x128xf32>
    %cst_244 = arith.constant 0.000000e+00 : f32
    %545 = vector.broadcast %cst_244 : f32 to vector<8x128xf32>
    %546 = arith.maximumf %544, %545 : vector<8x128xf32>
    %c8_245 = arith.constant 8 : index
    %c7_246 = arith.constant 7 : index
    %547 = memref.load %arg3[%c8_245, %c7_246] : memref<10x8xf32, #tpu.memory_space<smem>>
    %548 = vector.broadcast %547 : f32 to vector<8x128xf32>
    %549 = arith.mulf %546, %548 : vector<8x128xf32>
    %550 = arith.addf %491, %549 : vector<8x128xf32>
    %c9_247 = arith.constant 9 : index
    %c0_248 = arith.constant 0 : index
    %551 = memref.load %arg3[%c9_247, %c0_248] : memref<10x8xf32, #tpu.memory_space<smem>>
    %552 = vector.broadcast %551 : f32 to vector<8x128xf32>
    %553 = arith.addf %550, %552 : vector<8x128xf32>
    %c0_249 = arith.constant 0 : index
    %c0_250 = arith.constant 0 : index
    %554 = vector.load %arg4[%c0_249, %c0_250] : memref<8x128xf32, #tpu.memory_space<vmem>>, vector<8x128xf32>
    tpu.vector_store %arg4[%c0_249, %c0_250], %553 {strides = array<i32>} : memref<8x128xf32, #tpu.memory_space<vmem>>, vector<8x128xf32>,
    return
  }
  func.func @transform_0(%arg0: i32) -> (i32, i32) {
    %c0_i32 = arith.constant 0 : i32
    %c0_i32_0 = arith.constant 0 : i32
    return %c0_i32, %arg0 : i32, i32
  }
  func.func @transform_1(%arg0: i32) -> (i32, i32) {
    %c0_i32 = arith.constant 0 : i32
    %c0_i32_0 = arith.constant 0 : i32
    %c0_i32_1 = arith.constant 0 : i32
    return %c0_i32, %c0_i32_0 : i32, i32
  }
  func.func @transform_2(%arg0: i32) -> (i32, i32) {
    %c0_i32 = arith.constant 0 : i32
    %c0_i32_0 = arith.constant 0 : i32
    %c0_i32_1 = arith.constant 0 : i32
    return %c0_i32, %c0_i32_0 : i32, i32
  }
  func.func @transform_3(%arg0: i32) -> (i32, i32) {
    %c0_i32 = arith.constant 0 : i32
    %c0_i32_0 = arith.constant 0 : i32
    return %c0_i32, %arg0 : i32, i32
  }
}

</mosaic_0001>

<llo_original>
// kernel: adaptive_decoder_forward.1
$region0: #{adaptive_decoder_forward.1}
  #allocation0 [shape = 'u32[]', space=smem, size = 0x4, offset = 0x4, fixed_abs, tag = 'smem constant byte address 0x4 - core index']
  #allocation1 [shape = 'u32[144,128]{1,0:T(1,128)}', space=vmem, size = 0x12000, scoped, tag = 'internal scratch']
  %s0 = inlined_call_operand.vmem [shape: f32[32,128], index: 0, kind: input, shape index: {}]
  %s1 = inlined_call_operand.vmem [shape: f32[8,8], index: 1, kind: input, shape index: {}]
  %s2 = inlined_call_operand.vmem [shape: f32[10,8], index: 2, kind: input, shape index: {}]
  %s3 = inlined_call_operand.vmem [shape: f32[8,128], index: 3, kind: output, shape index: {}]
  %s4 = sld [smem:[#allocation0]]
  $region26: #{adaptive_decoder_forward.1} parent=0
    _
  %s6 = ssub.s32 1, %s4
  %s7 = scalar_select 0, %s6, %s4
  $region1: #{adaptive_decoder_forward.1} parent=0
    #allocation2 [shape = 'u8[8192]{0}', space=smem, size = 0x2000, scoped, tag = 'input window, operand 2, single buffered']
    #allocation3 [shape = 's32[1]{0}', space=sflag, size = 0x4, scoped, tag = 'scoped memory for adaptive_decoder_forward.1']
    %8 = vsyncpa [#allocation3], 0
    // Predicated region
    $region2: #{adaptive_decoder_forward.1} parent=1 // pred_check
      _
    $region3: #{adaptive_decoder_forward.1} parent=1 // pred_check_branch
      %10 = sbr.rel (0) target = $region5
    $region4: #{adaptive_decoder_forward.1} parent=1 // pred_region
      _
    $region5: #{adaptive_decoder_forward.1} parent=1 // pred_fallthru
      _
    // Predicated region
    $region6: #{adaptive_decoder_forward.1} parent=1 // pred_check
      _
    $region7: #{adaptive_decoder_forward.1} parent=1 // pred_check_branch
      %12 = sbr.rel (0) target = $region9
    $region8: #{adaptive_decoder_forward.1} parent=1 // pred_region
      _
    $region9: #{adaptive_decoder_forward.1} parent=1 // pred_fallthru
      _
    // Predicated region
    $region10: #{adaptive_decoder_forward.1} parent=1 // pred_check
      _
    $region11: #{adaptive_decoder_forward.1} parent=1 // pred_check_branch
      %14 = sbr.rel (0) target = $region13
    $region12: #{adaptive_decoder_forward.1} parent=1 // pred_region
      %s16 = ssub.s32 256, 256
      %17 = vsyncadd [#allocation3], %s16
      %s18 = sshll.u32 %s2, 4
      %s19 = int_to_ptr.vmem [resolvable:$true] %s18
      %24 = dma.vmem_to_smem %s19, 256, [#allocation2], [#allocation3], 128, 128, 8
    $region13: #{adaptive_decoder_forward.1} parent=1 // pred_fallthru
      _
    // Predicated region
    $region14: #{adaptive_decoder_forward.1} parent=1 // pred_check
      _
    $region15: #{adaptive_decoder_forward.1} parent=1 // pred_check_branch
      %26 = sbr.rel (0) target = $region17
    $region16: #{adaptive_decoder_forward.1} parent=1 // pred_region
      %27 = dma.done [#allocation3], 256
    $region17: #{adaptive_decoder_forward.1} parent=1 // pred_fallthru
      _
    %28 = sfence
    %v29 = vld [vmem:[%s1] sm:$0xff]
    %v30 = vld [vmem:[%s0] sm:$0x1]
    %v31 = vld [vmem:[%s0 + $0x8] sm:$0x1]
    %33 = vset.pattern.permute.xlu0 0
    %34 = vperm.xlu0 %33, %v29
    %v35 = vpop.permute.xlu0 %34
    %v37 = vlaneseq
    %v38 = vshrl.u32 %v37, 7
    %v39 = vsub.s32 0, %v38
    %v40 = vrot.slane %v30, %v39
    %v41 = vmul.f32 %v35, %v40
    %v42 = vlaneseq
    %v43 = vshrl.u32 %v42, 7
    %v44 = vsub.s32 0, %v43
    %v45 = vrot.slane %v31, %v44
    %v46 = vadd.f32 %v41, %v45
    %v47 = vmax.f32 %v46, 0.0
    %v48 = vld [vmem:[%s0 + $0x1] sm:$0x1]
    %v49 = vld [vmem:[%s0 + $0x9] sm:$0x1]
    %50 = vset.pattern.permute.xlu0 1
    %51 = vperm.xlu0 %50, %v29
    %v52 = vpop.permute.xlu0 %51
    %v54 = vlaneseq
    %v55 = vshrl.u32 %v54, 7
    %v56 = vsub.s32 0, %v55
    %v57 = vrot.slane %v48, %v56
    %v58 = vmul.f32 %v52, %v57
    %v59 = vlaneseq
    %v60 = vshrl.u32 %v59, 7
    %v61 = vsub.s32 0, %v60
    %v62 = vrot.slane %v49, %v61
    %v63 = vadd.f32 %v58, %v62
    %v64 = vmax.f32 %v63, 0.0
    %v65 = vld [vmem:[%s0 + $0x2] sm:$0x1]
    %v66 = vld [vmem:[%s0 + $0xa] sm:$0x1]
    %67 = vset.pattern.permute.xlu0 2
    %68 = vperm.xlu0 %67, %v29
    %v69 = vpop.permute.xlu0 %68
    %v71 = vlaneseq
    %v72 = vshrl.u32 %v71, 7
    %v73 = vsub.s32 0, %v72
    %v74 = vrot.slane %v65, %v73
    %v75 = vmul.f32 %v69, %v74
    %v76 = vlaneseq
    %v77 = vshrl.u32 %v76, 7
    %v78 = vsub.s32 0, %v77
    %v79 = vrot.slane %v66, %v78
    %v80 = vadd.f32 %v75, %v79
    %v81 = vmax.f32 %v80, 0.0
    %v82 = vld [vmem:[%s0 + $0x3] sm:$0x1]
    %v83 = vld [vmem:[%s0 + $0xb] sm:$0x1]
    %84 = vset.pattern.permute.xlu0 3
    %85 = vperm.xlu0 %84, %v29
    %v86 = vpop.permute.xlu0 %85
    %v88 = vlaneseq
    %v89 = vshrl.u32 %v88, 7
    %v90 = vsub.s32 0, %v89
    %v91 = vrot.slane %v82, %v90
    %v92 = vmul.f32 %v86, %v91
    %v93 = vlaneseq
    %v94 = vshrl.u32 %v93, 7
    %v95 = vsub.s32 0, %v94
    %v96 = vrot.slane %v83, %v95
    %v97 = vadd.f32 %v92, %v96
    %v98 = vmax.f32 %v97, 0.0
    %v99 = vld [vmem:[%s0 + $0x4] sm:$0x1]
    %v100 = vld [vmem:[%s0 + $0xc] sm:$0x1]
    %101 = vset.pattern.permute.xlu0 4
    %102 = vperm.xlu0 %101, %v29
    %v103 = vpop.permute.xlu0 %102
    %v105 = vlaneseq
    %v106 = vshrl.u32 %v105, 7
    %v107 = vsub.s32 0, %v106
    %v108 = vrot.slane %v99, %v107
    %v109 = vmul.f32 %v103, %v108
    %v110 = vlaneseq
    %v111 = vshrl.u32 %v110, 7
    %v112 = vsub.s32 0, %v111
    %v113 = vrot.slane %v100, %v112
    %v114 = vadd.f32 %v109, %v113
    %v115 = vmax.f32 %v114, 0.0
    %v116 = vld [vmem:[%s0 + $0x5] sm:$0x1]
    %v117 = vld [vmem:[%s0 + $0xd] sm:$0x1]
    %118 = vset.pattern.permute.xlu0 5
    %119 = vperm.xlu0 %118, %v29
    %v120 = vpop.permute.xlu0 %119
    %v122 = vlaneseq
    %v123 = vshrl.u32 %v122, 7
    %v124 = vsub.s32 0, %v123
    %v125 = vrot.slane %v116, %v124
    %v126 = vmul.f32 %v120, %v125
    %v127 = vlaneseq
    %v128 = vshrl.u32 %v127, 7
    %v129 = vsub.s32 0, %v128
    %v130 = vrot.slane %v117, %v129
    %v131 = vadd.f32 %v126, %v130
    %v132 = vmax.f32 %v131, 0.0
    %v133 = vld [vmem:[%s0 + $0x6] sm:$0x1]
    %v134 = vld [vmem:[%s0 + $0xe] sm:$0x1]
    %135 = vset.pattern.permute.xlu0 6
    %136 = vperm.xlu0 %135, %v29
    %v137 = vpop.permute.xlu0 %136
    %v139 = vlaneseq
    %v140 = vshrl.u32 %v139, 7
    %v141 = vsub.s32 0, %v140
    %v142 = vrot.slane %v133, %v141
    %v143 = vmul.f32 %v137, %v142
    %v144 = vlaneseq
    %v145 = vshrl.u32 %v144, 7
    %v146 = vsub.s32 0, %v145
    %v147 = vrot.slane %v134, %v146
    %v148 = vadd.f32 %v143, %v147
    %v149 = vmax.f32 %v148, 0.0
    %v150 = vld [vmem:[%s0 + $0x7] sm:$0x1]
    %v151 = vld [vmem:[%s0 + $0xf] sm:$0x1]
    %152 = vset.pattern.permute.xlu0 7
    %153 = vperm.xlu0 %152, %v29
    %v154 = vpop.permute.xlu0 %153
    %v156 = vlaneseq
    %v157 = vshrl.u32 %v156, 7
    %v158 = vsub.s32 0, %v157
    %v159 = vrot.slane %v150, %v158
    %v160 = vmul.f32 %v154, %v159
    %v161 = vlaneseq
    %v162 = vshrl.u32 %v161, 7
    %v163 = vsub.s32 0, %v162
    %v164 = vrot.slane %v151, %v163
    %v165 = vadd.f32 %v160, %v164
    %v166 = vmax.f32 %v165, 0.0
    %s167 = sld [smem:[#allocation2]]
    %v168 = vstv %s167
    %v169 = vmul.f32 %v47, %v168
    %s170 = sld [smem:[#allocation2 + $0x1]]
    %v171 = vstv %s170
    %v172 = vmul.f32 %v64, %v171
    %v173 = vadd.f32 %v169, %v172
    %s174 = sld [smem:[#allocation2 + $0x2]]
    %v175 = vstv %s174
    %v176 = vmul.f32 %v81, %v175
    %v177 = vadd.f32 %v173, %v176
    %s178 = sld [smem:[#allocation2 + $0x3]]
    %v179 = vstv %s178
    %v180 = vmul.f32 %v98, %v179
    %v181 = vadd.f32 %v177, %v180
    %s182 = sld [smem:[#allocation2 + $0x4]]
    %v183 = vstv %s182
    %v184 = vmul.f32 %v115, %v183
    %v185 = vadd.f32 %v181, %v184
    %s186 = sld [smem:[#allocation2 + $0x5]]
    %v187 = vstv %s186
    %v188 = vmul.f32 %v132, %v187
    %v189 = vadd.f32 %v185, %v188
    %s190 = sld [smem:[#allocation2 + $0x6]]
    %v191 = vstv %s190
    %v192 = vmul.f32 %v149, %v191
    %v193 = vadd.f32 %v189, %v192
    %s194 = sld [smem:[#allocation2 + $0x7]]
    %v195 = vstv %s194
    %v196 = vmul.f32 %v166, %v195
    %v197 = vadd.f32 %v193, %v196
    %v198 = vrot.slane %v197, 4
    %v199 = vadd.f32 %v197, %v198
    %v200 = vrot.slane %v199, 2
    %v201 = vadd.f32 %v199, %v200
    %v202 = vrot.slane %v201, 1
    %v203 = vadd.f32 %v201, %v202
    %v204 = vrcp.pop 8.0
    %v205 = vmul.f32 %v203, %v204
    %v206 = vsub.f32 %v197, %v205
    %v207 = vmul.f32 %v206, %v206
    %v208 = vrot.slane %v207, 4
    %v209 = vadd.f32 %v207, %v208
    %v210 = vrot.slane %v209, 2
    %v211 = vadd.f32 %v209, %v210
    %v212 = vrot.slane %v211, 1
    %v213 = vadd.f32 %v211, %v212
    %v214 = vmul.f32 %v213, %v204
    %v215 = vadd.f32 %v214, 1e-05
    %v216 = vrsqrt.pop %v215
    %v217 = vmul.f32 %v206, %v216
    %v218 = vld [vmem:[%s0 + $0x10] sm:$0x1]
    %v219 = vld [vmem:[%s0 + $0x18] sm:$0x1]
    %v220 = vlaneseq
    %v221 = vshrl.u32 %v220, 7
    %v222 = vsub.s32 0, %v221
    %v223 = vrot.slane %v218, %v222
    %v224 = vmul.f32 %v217, %v223
    %v225 = vlaneseq
    %v226 = vshrl.u32 %v225, 7
    %v227 = vsub.s32 0, %v226
    %v228 = vrot.slane %v219, %v227
    %v229 = vadd.f32 %v224, %v228
    %v230 = vmax.f32 %v229, 0.0
    %s231 = sld [smem:[#allocation2 + $0x400]]
    %v232 = vstv %s231
    %v233 = vmul.f32 %v230, %v232
    %s234 = sld [smem:[#allocation2 + $0x80]]
    %v235 = vstv %s234
    %v236 = vmul.f32 %v47, %v235
    %s237 = sld [smem:[#allocation2 + $0x81]]
    %v238 = vstv %s237
    %v239 = vmul.f32 %v64, %v238
    %v240 = vadd.f32 %v236, %v239
    %s241 = sld [smem:[#allocation2 + $0x82]]
    %v242 = vstv %s241
    %v243 = vmul.f32 %v81, %v242
    %v244 = vadd.f32 %v240, %v243
    %s245 = sld [smem:[#allocation2 + $0x83]]
    %v246 = vstv %s245
    %v247 = vmul.f32 %v98, %v246
    %v248 = vadd.f32 %v244, %v247
    %s249 = sld [smem:[#allocation2 + $0x84]]
    %v250 = vstv %s249
    %v251 = vmul.f32 %v115, %v250
    %v252 = vadd.f32 %v248, %v251
    %s253 = sld [smem:[#allocation2 + $0x85]]
    %v254 = vstv %s253
    %v255 = vmul.f32 %v132, %v254
    %v256 = vadd.f32 %v252, %v255
    %s257 = sld [smem:[#allocation2 + $0x86]]
    %v258 = vstv %s257
    %v259 = vmul.f32 %v149, %v258
    %v260 = vadd.f32 %v256, %v259
    %s261 = sld [smem:[#allocation2 + $0x87]]
    %v262 = vstv %s261
    %v263 = vmul.f32 %v166, %v262
    %v264 = vadd.f32 %v260, %v263
    %v265 = vrot.slane %v264, 4
    %v266 = vadd.f32 %v264, %v265
    %v267 = vrot.slane %v266, 2
    %v268 = vadd.f32 %v266, %v267
    %v269 = vrot.slane %v268, 1
    %v270 = vadd.f32 %v268, %v269
    %v271 = vmul.f32 %v270, %v204
    %v272 = vsub.f32 %v264, %v271
    %v273 = vmul.f32 %v272, %v272
    %v274 = vrot.slane %v273, 4
    %v275 = vadd.f32 %v273, %v274
    %v276 = vrot.slane %v275, 2
    %v277 = vadd.f32 %v275, %v276
    %v278 = vrot.slane %v277, 1
    %v279 = vadd.f32 %v277, %v278
    %v280 = vmul.f32 %v279, %v204
    %v281 = vadd.f32 %v280, 1e-05
    %v282 = vrsqrt.pop %v281
    %v283 = vmul.f32 %v272, %v282
    %v284 = vld [vmem:[%s0 + $0x11] sm:$0x1]
    %v285 = vld [vmem:[%s0 + $0x19] sm:$0x1]
    %v286 = vlaneseq
    %v287 = vshrl.u32 %v286, 7
    %v288 = vsub.s32 0, %v287
    %v289 = vrot.slane %v284, %v288
    %v290 = vmul.f32 %v283, %v289
    %v291 = vlaneseq
    %v292 = vshrl.u32 %v291, 7
    %v293 = vsub.s32 0, %v292
    %v294 = vrot.slane %v285, %v293
    %v295 = vadd.f32 %v290, %v294
    %v296 = vmax.f32 %v295, 0.0
    %s297 = sld [smem:[#allocation2 + $0x401]]
    %v298 = vstv %s297
    %v299 = vmul.f32 %v296, %v298
    %v300 = vadd.f32 %v233, %v299
    %s301 = sld [smem:[#allocation2 + $0x100]]
    %v302 = vstv %s301
    %v303 = vmul.f32 %v47, %v302
    %s304 = sld [smem:[#allocation2 + $0x101]]
    %v305 = vstv %s304
    %v306 = vmul.f32 %v64, %v305
    %v307 = vadd.f32 %v303, %v306
    %s308 = sld [smem:[#allocation2 + $0x102]]
    %v309 = vstv %s308
    %v310 = vmul.f32 %v81, %v309
    %v311 = vadd.f32 %v307, %v310
    %s312 = sld [smem:[#allocation2 + $0x103]]
    %v313 = vstv %s312
    %v314 = vmul.f32 %v98, %v313
    %v315 = vadd.f32 %v311, %v314
    %s316 = sld [smem:[#allocation2 + $0x104]]
    %v317 = vstv %s316
    %v318 = vmul.f32 %v115, %v317
    %v319 = vadd.f32 %v315, %v318
    %s320 = sld [smem:[#allocation2 + $0x105]]
    %v321 = vstv %s320
    %v322 = vmul.f32 %v132, %v321
    %v323 = vadd.f32 %v319, %v322
    %s324 = sld [smem:[#allocation2 + $0x106]]
    %v325 = vstv %s324
    %v326 = vmul.f32 %v149, %v325
    %v327 = vadd.f32 %v323, %v326
    %s328 = sld [smem:[#allocation2 + $0x107]]
    %v329 = vstv %s328
    %v330 = vmul.f32 %v166, %v329
    %v331 = vadd.f32 %v327, %v330
    %v332 = vrot.slane %v331, 4
    %v333 = vadd.f32 %v331, %v332
    %v334 = vrot.slane %v333, 2
    %v335 = vadd.f32 %v333, %v334
    %v336 = vrot.slane %v335, 1
    %v337 = vadd.f32 %v335, %v336
    %v338 = vmul.f32 %v337, %v204
    %v339 = vsub.f32 %v331, %v338
    %v340 = vmul.f32 %v339, %v339
    %v341 = vrot.slane %v340, 4
    %v342 = vadd.f32 %v340, %v341
    %v343 = vrot.slane %v342, 2
    %v344 = vadd.f32 %v342, %v343
    %v345 = vrot.slane %v344, 1
    %v346 = vadd.f32 %v344, %v345
    %v347 = vmul.f32 %v346, %v204
    %v348 = vadd.f32 %v347, 1e-05
    %v349 = vrsqrt.pop %v348
    %v350 = vmul.f32 %v339, %v349
    %v351 = vld [vmem:[%s0 + $0x12] sm:$0x1]
    %v352 = vld [vmem:[%s0 + $0x1a] sm:$0x1]
    %v353 = vlaneseq
    %v354 = vshrl.u32 %v353, 7
    %v355 = vsub.s32 0, %v354
    %v356 = vrot.slane %v351, %v355
    %v357 = vmul.f32 %v350, %v356
    %v358 = vlaneseq
    %v359 = vshrl.u32 %v358, 7
    %v360 = vsub.s32 0, %v359
    %v361 = vrot.slane %v352, %v360
    %v362 = vadd.f32 %v357, %v361
    %v363 = vmax.f32 %v362, 0.0
    %s364 = sld [smem:[#allocation2 + $0x402]]
    %v365 = vstv %s364
    %v366 = vmul.f32 %v363, %v365
    %v367 = vadd.f32 %v300, %v366
    %s368 = sld [smem:[#allocation2 + $0x180]]
    %v369 = vstv %s368
    %v370 = vmul.f32 %v47, %v369
    %s371 = sld [smem:[#allocation2 + $0x181]]
    %v372 = vstv %s371
    %v373 = vmul.f32 %v64, %v372
    %v374 = vadd.f32 %v370, %v373
    %s375 = sld [smem:[#allocation2 + $0x182]]
    %v376 = vstv %s375
    %v377 = vmul.f32 %v81, %v376
    %v378 = vadd.f32 %v374, %v377
    %s379 = sld [smem:[#allocation2 + $0x183]]
    %v380 = vstv %s379
    %v381 = vmul.f32 %v98, %v380
    %v382 = vadd.f32 %v378, %v381
    %s383 = sld [smem:[#allocation2 + $0x184]]
    %v384 = vstv %s383
    %v385 = vmul.f32 %v115, %v384
    %v386 = vadd.f32 %v382, %v385
    %s387 = sld [smem:[#allocation2 + $0x185]]
    %v388 = vstv %s387
    %v389 = vmul.f32 %v132, %v388
    %v390 = vadd.f32 %v386, %v389
    %s391 = sld [smem:[#allocation2 + $0x186]]
    %v392 = vstv %s391
    %v393 = vmul.f32 %v149, %v392
    %v394 = vadd.f32 %v390, %v393
    %s395 = sld [smem:[#allocation2 + $0x187]]
    %v396 = vstv %s395
    %v397 = vmul.f32 %v166, %v396
    %v398 = vadd.f32 %v394, %v397
    %v399 = vrot.slane %v398, 4
    %v400 = vadd.f32 %v398, %v399
    %v401 = vrot.slane %v400, 2
    %v402 = vadd.f32 %v400, %v401
    %v403 = vrot.slane %v402, 1
    %v404 = vadd.f32 %v402, %v403
    %v405 = vmul.f32 %v404, %v204
    %v406 = vsub.f32 %v398, %v405
    %v407 = vmul.f32 %v406, %v406
    %v408 = vrot.slane %v407, 4
    %v409 = vadd.f32 %v407, %v408
    %v410 = vrot.slane %v409, 2
    %v411 = vadd.f32 %v409, %v410
    %v412 = vrot.slane %v411, 1
    %v413 = vadd.f32 %v411, %v412
    %v414 = vmul.f32 %v413, %v204
    %v415 = vadd.f32 %v414, 1e-05
    %v416 = vrsqrt.pop %v415
    %v417 = vmul.f32 %v406, %v416
    %v418 = vld [vmem:[%s0 + $0x13] sm:$0x1]
    %v419 = vld [vmem:[%s0 + $0x1b] sm:$0x1]
    %v420 = vlaneseq
    %v421 = vshrl.u32 %v420, 7
    %v422 = vsub.s32 0, %v421
    %v423 = vrot.slane %v418, %v422
    %v424 = vmul.f32 %v417, %v423
    %v425 = vlaneseq
    %v426 = vshrl.u32 %v425, 7
    %v427 = vsub.s32 0, %v426
    %v428 = vrot.slane %v419, %v427
    %v429 = vadd.f32 %v424, %v428
    %v430 = vmax.f32 %v429, 0.0
    %s431 = sld [smem:[#allocation2 + $0x403]]
    %v432 = vstv %s431
    %v433 = vmul.f32 %v430, %v432
    %v434 = vadd.f32 %v367, %v433
    %s435 = sld [smem:[#allocation2 + $0x200]]
    %v436 = vstv %s435
    %v437 = vmul.f32 %v47, %v436
    %s438 = sld [smem:[#allocation2 + $0x201]]
    %v439 = vstv %s438
    %v440 = vmul.f32 %v64, %v439
    %v441 = vadd.f32 %v437, %v440
    %s442 = sld [smem:[#allocation2 + $0x202]]
    %v443 = vstv %s442
    %v444 = vmul.f32 %v81, %v443
    %v445 = vadd.f32 %v441, %v444
    %s446 = sld [smem:[#allocation2 + $0x203]]
    %v447 = vstv %s446
    %v448 = vmul.f32 %v98, %v447
    %v449 = vadd.f32 %v445, %v448
    %s450 = sld [smem:[#allocation2 + $0x204]]
    %v451 = vstv %s450
    %v452 = vmul.f32 %v115, %v451
    %v453 = vadd.f32 %v449, %v452
    %s454 = sld [smem:[#allocation2 + $0x205]]
    %v455 = vstv %s454
    %v456 = vmul.f32 %v132, %v455
    %v457 = vadd.f32 %v453, %v456
    %s458 = sld [smem:[#allocation2 + $0x206]]
    %v459 = vstv %s458
    %v460 = vmul.f32 %v149, %v459
    %v461 = vadd.f32 %v457, %v460
    %s462 = sld [smem:[#allocation2 + $0x207]]
    %v463 = vstv %s462
    %v464 = vmul.f32 %v166, %v463
    %v465 = vadd.f32 %v461, %v464
    %v466 = vrot.slane %v465, 4
    %v467 = vadd.f32 %v465, %v466
    %v468 = vrot.slane %v467, 2
    %v469 = vadd.f32 %v467, %v468
    %v470 = vrot.slane %v469, 1
    %v471 = vadd.f32 %v469, %v470
    %v472 = vmul.f32 %v471, %v204
    %v473 = vsub.f32 %v465, %v472
    %v474 = vmul.f32 %v473, %v473
    %v475 = vrot.slane %v474, 4
    %v476 = vadd.f32 %v474, %v475
    %v477 = vrot.slane %v476, 2
    %v478 = vadd.f32 %v476, %v477
    %v479 = vrot.slane %v478, 1
    %v480 = vadd.f32 %v478, %v479
    %v481 = vmul.f32 %v480, %v204
    %v482 = vadd.f32 %v481, 1e-05
    %v483 = vrsqrt.pop %v482
    %v484 = vmul.f32 %v473, %v483
    %v485 = vld [vmem:[%s0 + $0x14] sm:$0x1]
    %v486 = vld [vmem:[%s0 + $0x1c] sm:$0x1]
    %v487 = vlaneseq
    %v488 = vshrl.u32 %v487, 7
    %v489 = vsub.s32 0, %v488
    %v490 = vrot.slane %v485, %v489
    %v491 = vmul.f32 %v484, %v490
    %v492 = vlaneseq
    %v493 = vshrl.u32 %v492, 7
    %v494 = vsub.s32 0, %v493
    %v495 = vrot.slane %v486, %v494
    %v496 = vadd.f32 %v491, %v495
    %v497 = vmax.f32 %v496, 0.0
    %s498 = sld [smem:[#allocation2 + $0x404]]
    %v499 = vstv %s498
    %v500 = vmul.f32 %v497, %v499
    %v501 = vadd.f32 %v434, %v500
    %s502 = sld [smem:[#allocation2 + $0x280]]
    %v503 = vstv %s502
    %v504 = vmul.f32 %v47, %v503
    %s505 = sld [smem:[#allocation2 + $0x281]]
    %v506 = vstv %s505
    %v507 = vmul.f32 %v64, %v506
    %v508 = vadd.f32 %v504, %v507
    %s509 = sld [smem:[#allocation2 + $0x282]]
    %v510 = vstv %s509
    %v511 = vmul.f32 %v81, %v510
    %v512 = vadd.f32 %v508, %v511
    %s513 = sld [smem:[#allocation2 + $0x283]]
    %v514 = vstv %s513
    %v515 = vmul.f32 %v98, %v514
    %v516 = vadd.f32 %v512, %v515
    %s517 = sld [smem:[#allocation2 + $0x284]]
    %v518 = vstv %s517
    %v519 = vmul.f32 %v115, %v518
    %v520 = vadd.f32 %v516, %v519
    %s521 = sld [smem:[#allocation2 + $0x285]]
    %v522 = vstv %s521
    %v523 = vmul.f32 %v132, %v522
    %v524 = vadd.f32 %v520, %v523
    %s525 = sld [smem:[#allocation2 + $0x286]]
    %v526 = vstv %s525
    %v527 = vmul.f32 %v149, %v526
    %v528 = vadd.f32 %v524, %v527
    %s529 = sld [smem:[#allocation2 + $0x287]]
    %v530 = vstv %s529
    %v531 = vmul.f32 %v166, %v530
    %v532 = vadd.f32 %v528, %v531
    %v533 = vrot.slane %v532, 4
    %v534 = vadd.f32 %v532, %v533
    %v535 = vrot.slane %v534, 2
    %v536 = vadd.f32 %v534, %v535
    %v537 = vrot.slane %v536, 1
    %v538 = vadd.f32 %v536, %v537
    %v539 = vmul.f32 %v538, %v204
    %v540 = vsub.f32 %v532, %v539
    %v541 = vmul.f32 %v540, %v540
    %v542 = vrot.slane %v541, 4
    %v543 = vadd.f32 %v541, %v542
    %v544 = vrot.slane %v543, 2
    %v545 = vadd.f32 %v543, %v544
    %v546 = vrot.slane %v545, 1
    %v547 = vadd.f32 %v545, %v546
    %v548 = vmul.f32 %v547, %v204
    %v549 = vadd.f32 %v548, 1e-05
    %v550 = vrsqrt.pop %v549
    %v551 = vmul.f32 %v540, %v550
    %v552 = vld [vmem:[%s0 + $0x15] sm:$0x1]
    %v553 = vld [vmem:[%s0 + $0x1d] sm:$0x1]
    %v554 = vlaneseq
    %v555 = vshrl.u32 %v554, 7
    %v556 = vsub.s32 0, %v555
    %v557 = vrot.slane %v552, %v556
    %v558 = vmul.f32 %v551, %v557
    %v559 = vlaneseq
    %v560 = vshrl.u32 %v559, 7
    %v561 = vsub.s32 0, %v560
    %v562 = vrot.slane %v553, %v561
    %v563 = vadd.f32 %v558, %v562
    %v564 = vmax.f32 %v563, 0.0
    %s565 = sld [smem:[#allocation2 + $0x405]]
    %v566 = vstv %s565
    %v567 = vmul.f32 %v564, %v566
    %v568 = vadd.f32 %v501, %v567
    %s569 = sld [smem:[#allocation2 + $0x300]]
    %v570 = vstv %s569
    %v571 = vmul.f32 %v47, %v570
    %s572 = sld [smem:[#allocation2 + $0x301]]
    %v573 = vstv %s572
    %v574 = vmul.f32 %v64, %v573
    %v575 = vadd.f32 %v571, %v574
    %s576 = sld [smem:[#allocation2 + $0x302]]
    %v577 = vstv %s576
    %v578 = vmul.f32 %v81, %v577
    %v579 = vadd.f32 %v575, %v578
    %s580 = sld [smem:[#allocation2 + $0x303]]
    %v581 = vstv %s580
    %v582 = vmul.f32 %v98, %v581
    %v583 = vadd.f32 %v579, %v582
    %s584 = sld [smem:[#allocation2 + $0x304]]
    %v585 = vstv %s584
    %v586 = vmul.f32 %v115, %v585
    %v587 = vadd.f32 %v583, %v586
    %s588 = sld [smem:[#allocation2 + $0x305]]
    %v589 = vstv %s588
    %v590 = vmul.f32 %v132, %v589
    %v591 = vadd.f32 %v587, %v590
    %s592 = sld [smem:[#allocation2 + $0x306]]
    %v593 = vstv %s592
    %v594 = vmul.f32 %v149, %v593
    %v595 = vadd.f32 %v591, %v594
    %s596 = sld [smem:[#allocation2 + $0x307]]
    %v597 = vstv %s596
    %v598 = vmul.f32 %v166, %v597
    %v599 = vadd.f32 %v595, %v598
    %v600 = vrot.slane %v599, 4
    %v601 = vadd.f32 %v599, %v600
    %v602 = vrot.slane %v601, 2
    %v603 = vadd.f32 %v601, %v602
    %v604 = vrot.slane %v603, 1
    %v605 = vadd.f32 %v603, %v604
    %v606 = vmul.f32 %v605, %v204
    %v607 = vsub.f32 %v599, %v606
    %v608 = vmul.f32 %v607, %v607
    %v609 = vrot.slane %v608, 4
    %v610 = vadd.f32 %v608, %v609
    %v611 = vrot.slane %v610, 2
    %v612 = vadd.f32 %v610, %v611
    %v613 = vrot.slane %v612, 1
    %v614 = vadd.f32 %v612, %v613
    %v615 = vmul.f32 %v614, %v204
    %v616 = vadd.f32 %v615, 1e-05
    %v617 = vrsqrt.pop %v616
    %v618 = vmul.f32 %v607, %v617
    %v619 = vld [vmem:[%s0 + $0x16] sm:$0x1]
    %v620 = vld [vmem:[%s0 + $0x1e] sm:$0x1]
    %v621 = vlaneseq
    %v622 = vshrl.u32 %v621, 7
    %v623 = vsub.s32 0, %v622
    %v624 = vrot.slane %v619, %v623
    %v625 = vmul.f32 %v618, %v624
    %v626 = vlaneseq
    %v627 = vshrl.u32 %v626, 7
    %v628 = vsub.s32 0, %v627
    %v629 = vrot.slane %v620, %v628
    %v630 = vadd.f32 %v625, %v629
    %v631 = vmax.f32 %v630, 0.0
    %s632 = sld [smem:[#allocation2 + $0x406]]
    %v633 = vstv %s632
    %v634 = vmul.f32 %v631, %v633
    %v635 = vadd.f32 %v568, %v634
    %s636 = sld [smem:[#allocation2 + $0x380]]
    %v637 = vstv %s636
    %v638 = vmul.f32 %v47, %v637
    %s639 = sld [smem:[#allocation2 + $0x381]]
    %v640 = vstv %s639
    %v641 = vmul.f32 %v64, %v640
    %v642 = vadd.f32 %v638, %v641
    %s643 = sld [smem:[#allocation2 + $0x382]]
    %v644 = vstv %s643
    %v645 = vmul.f32 %v81, %v644
    %v646 = vadd.f32 %v642, %v645
    %s647 = sld [smem:[#allocation2 + $0x383]]
    %v648 = vstv %s647
    %v649 = vmul.f32 %v98, %v648
    %v650 = vadd.f32 %v646, %v649
    %s651 = sld [smem:[#allocation2 + $0x384]]
    %v652 = vstv %s651
    %v653 = vmul.f32 %v115, %v652
    %v654 = vadd.f32 %v650, %v653
    %s655 = sld [smem:[#allocation2 + $0x385]]
    %v656 = vstv %s655
    %v657 = vmul.f32 %v132, %v656
    %v658 = vadd.f32 %v654, %v657
    %s659 = sld [smem:[#allocation2 + $0x386]]
    %v660 = vstv %s659
    %v661 = vmul.f32 %v149, %v660
    %v662 = vadd.f32 %v658, %v661
    %s663 = sld [smem:[#allocation2 + $0x387]]
    %v664 = vstv %s663
    %v665 = vmul.f32 %v166, %v664
    %v666 = vadd.f32 %v662, %v665
    %v667 = vrot.slane %v666, 4
    %v668 = vadd.f32 %v666, %v667
    %v669 = vrot.slane %v668, 2
    %v670 = vadd.f32 %v668, %v669
    %v671 = vrot.slane %v670, 1
    %v672 = vadd.f32 %v670, %v671
    %v673 = vmul.f32 %v672, %v204
    %v674 = vsub.f32 %v666, %v673
    %v675 = vmul.f32 %v674, %v674
    %v676 = vrot.slane %v675, 4
    %v677 = vadd.f32 %v675, %v676
    %v678 = vrot.slane %v677, 2
    %v679 = vadd.f32 %v677, %v678
    %v680 = vrot.slane %v679, 1
    %v681 = vadd.f32 %v679, %v680
    %v682 = vmul.f32 %v681, %v204
    %v683 = vadd.f32 %v682, 1e-05
    %v684 = vrsqrt.pop %v683
    %v685 = vmul.f32 %v674, %v684
    %v686 = vld [vmem:[%s0 + $0x17] sm:$0x1]
    %v687 = vld [vmem:[%s0 + $0x1f] sm:$0x1]
    %v688 = vlaneseq
    %v689 = vshrl.u32 %v688, 7
    %v690 = vsub.s32 0, %v689
    %v691 = vrot.slane %v686, %v690
    %v692 = vmul.f32 %v685, %v691
    %v693 = vlaneseq
    %v694 = vshrl.u32 %v693, 7
    %v695 = vsub.s32 0, %v694
    %v696 = vrot.slane %v687, %v695
    %v697 = vadd.f32 %v692, %v696
    %v698 = vmax.f32 %v697, 0.0
    %s699 = sld [smem:[#allocation2 + $0x407]]
    %v700 = vstv %s699
    %v701 = vmul.f32 %v698, %v700
    %v702 = vadd.f32 %v635, %v701
    %s703 = sld [smem:[#allocation2 + $0x480]]
    %v704 = vstv %s703
    %v705 = vadd.f32 %v702, %v704
    %706 = vst [vmem:[%s3] sm:$0xff] %v705
    // Predicated region
    $region18: #{adaptive_decoder_forward.1} parent=1 // pred_check
      _
    $region19: #{adaptive_decoder_forward.1} parent=1 // pred_check_branch
      %708 = sbr.rel (0) target = $region21
    $region20: #{adaptive_decoder_forward.1} parent=1 // pred_region
      _
    $region21: #{adaptive_decoder_forward.1} parent=1 // pred_fallthru
      _
    // Predicated region
    $region22: #{adaptive_decoder_forward.1} parent=1 // pred_check
      _
    $region23: #{adaptive_decoder_forward.1} parent=1 // pred_check_branch
      %710 = sbr.rel (0) target = $region25
    $region24: #{adaptive_decoder_forward.1} parent=1 // pred_region
      _
    $region25: #{adaptive_decoder_forward.1} parent=1 // pred_fallthru
      _
    %711 = vsyncpa [#allocation3], 1

</llo_original>
